<compile_context>
chip_gen: v7x
topology: tpu7x:2x2x1
jax: 0.10.0
libtpu: 0.0.40
codegen_flags: <defaults>
</compile_context>

<pallas_src>
import jax
import jax.numpy as jnp
from jax.experimental import pallas as pl
from jax.experimental.pallas import tpu as pltpu

EPS = 1e-5
V_TH = 1.0  # IF neuron firing threshold


# ---------------------------- fused Pallas kernel -----------------------------

def _fused_net_kernel(pt_ref, wt_ref, bc_ref, lw_ref, lb_ref, out_ref):
    """Fused Conv(BN folded) -> IF -> Flatten(NCHW) -> Linear -> IF.

    pt_ref : [K*Cin, N*Ho*Wo]  im2col patches, transposed (contraction on sublanes)
    wt_ref : [Cout, K*Cin]     BN-folded conv weight
    bc_ref : [Cout, 1]         BN-folded per-channel bias
    lw_ref : [Cout*Ho*Wo, 10]  linear weight, rows in PyTorch NCHW-flatten order
    lb_ref : [1, 10]           linear bias
    out_ref: [N, 10]           output spikes
    """
    cout = wt_ref.shape[0]
    p = pt_ref.shape[1]
    n = out_ref.shape[0]
    howo = p // n

    # Conv + folded BN on the MXU; output channels land on the sublane axis.
    yt = jnp.dot(wt_ref[...], pt_ref[...],
                 preferred_element_type=jnp.float32) + bc_ref[...]
    # IF neuron (single step): spike = 1[y >= v_th]
    spk = (yt >= V_TH).astype(jnp.float32)            # [Cout, N*Ho*Wo]

    # Linear over NCHW-flattened spikes (feature index = c*Ho*Wo + hw),
    # decomposed per output channel so no relayout/reshape is needed in-kernel.
    accs = [lb_ref[...] for _ in range(n)]            # each [1, 10]
    for c in range(cout):
        w_c = lw_ref[c * howo:(c + 1) * howo, :]      # [Ho*Wo, 10]
        for b in range(n):
            rows = spk[c:c + 1, b * howo:(b + 1) * howo]   # [1, Ho*Wo]
            accs[b] = accs[b] + jnp.dot(rows, w_c,
                                        preferred_element_type=jnp.float32)

    for b in range(n):
        out_ref[b:b + 1, :] = (accs[b] >= V_TH).astype(out_ref.dtype)


def _full_spec(shape):
    # whole-array block (tiny problem, everything fits in VMEM)
    return pl.BlockSpec(shape, lambda i, _nd=len(shape): (0,) * _nd)


# ------------------------------ wrapper / glue ---------------------------------

def _extract_patches_t(x_nhwc, k, stride):
    """im2col (pure data-movement glue); returns patches transposed: [k*k*Cin, N*Ho*Wo]."""
    n, h, w, c = x_nhwc.shape
    ho = (h - k) // stride + 1
    wo = (w - k) // stride + 1
    cols = []
    for dh in range(k):
        for dw in range(k):
            cols.append(x_nhwc[:, dh:dh + stride * ho:stride,
                               dw:dw + stride * wo:stride, :])
    patches = jnp.stack(cols, axis=3)                  # [N, Ho, Wo, k*k, Cin]
    patches = patches.reshape(n * ho * wo, k * k * c)  # rows = n*Ho*Wo + hw
    return patches.T, ho, wo                           # [k*k*Cin, N*Ho*Wo]


@jax.jit
def net_forward(x_nchw, params):
    n, cin = x_nchw.shape[0], x_nchw.shape[1]
    cout = params["conv_w"].shape[0]
    n_classes = params["lin_w"].shape[1]

    x_nhwc = jnp.transpose(x_nchw, (0, 2, 3, 1)).astype(jnp.float32)
    patches_t, ho, wo = _extract_patches_t(x_nhwc, k=3, stride=2)
    kdim, p_cols = patches_t.shape                     # [3*3*cin, n*ho*wo]

    # PyTorch conv weight [oc, ic, kh, kw] -> [oc, kh*kw*ic] matching patch col order.
    wt_mat = jnp.transpose(params["conv_w"], (0, 2, 3, 1)).reshape(cout, kdim)
    # Fold BatchNorm2d (inference mode) into the conv weight + per-channel bias.
    scale = params["bn_gamma"] * jax.lax.rsqrt(params["bn_var"] + EPS)   # [cout]
    wt_fold = wt_mat * scale[:, None]                                    # [cout, kdim]
    b_fold = (params["bn_beta"] - params["bn_mean"] * scale)[:, None]    # [cout, 1]

    feat_dim = params["lin_w"].shape[0]                # = cout*ho*wo

    flops = 2 * cout * kdim * p_cols + 2 * n * feat_dim * n_classes
    bytes_accessed = 4 * (kdim * p_cols + cout * kdim + cout
                          + feat_dim * n_classes + n_classes + n * n_classes)

    out = pl.pallas_call(
        _fused_net_kernel,
        grid=(1,),
        in_specs=[
            _full_spec((kdim, p_cols)),
            _full_spec((cout, kdim)),
            _full_spec((cout, 1)),
            _full_spec((feat_dim, n_classes)),
            _full_spec((1, n_classes)),
        ],
        out_specs=_full_spec((n, n_classes)),
        out_shape=jax.ShapeDtypeStruct((n, n_classes), jnp.float32),
        compiler_params=pltpu.CompilerParams(dimension_semantics=("arbitrary",)),
        cost_estimate=pl.CostEstimate(flops=flops, transcendentals=0,
                                      bytes_accessed=bytes_accessed),
    )(patches_t, wt_fold, b_fold, params["lin_w"], params["lin_b"])
    return out


def init_params(key, in_channels=2, channels=8, n_classes=10):
    feat = 16 * 16 * channels
    ks = jax.random.split(key, 7)
    conv_w = jax.random.normal(ks[0], (channels, in_channels, 3, 3), jnp.float32) \
        / jnp.sqrt(9.0 * in_channels)
    bn_gamma = 1.0 + 0.1 * jax.random.normal(ks[1], (channels,), jnp.float32)
    bn_beta = 0.1 * jax.random.normal(ks[2], (channels,), jnp.float32)
    bn_mean = 0.1 * jax.random.normal(ks[3], (channels,), jnp.float32)
    bn_var = jax.random.uniform(ks[4], (channels,), jnp.float32, minval=0.5, maxval=1.5)
    # lin_w rows are in PyTorch NCHW-flatten order: f = c*Ho*Wo + h*Wo + w
    lin_w = jax.random.normal(ks[5], (feat, n_classes), jnp.float32) / jnp.sqrt(float(feat))
    lin_b = 0.1 * jax.random.normal(ks[6], (1, n_classes), jnp.float32)
    return dict(conv_w=conv_w, bn_gamma=bn_gamma, bn_beta=bn_beta,
                bn_mean=bn_mean, bn_var=bn_var, lin_w=lin_w, lin_b=lin_b)


if __name__ == "__main__":
    key = jax.random.PRNGKey(0)
    k_param, k_x = jax.random.split(key)

    # Input 33x33 => conv(k=3, s=2, p=0) output 16x16, matching Linear(16*16*channels).
    batch, in_channels, channels = 2, 2, 8
    x = jax.random.normal(k_x, (batch, in_channels, 33, 33), jnp.float32)
    params = init_params(k_param, in_channels=in_channels, channels=channels, n_classes=10)

    out = net_forward(x, params)
    out = jax.block_until_ready(out)

    assert out.shape == (batch, 10), out.shape
    assert out.dtype == jnp.float32
    # spikes are binary
    assert bool(jnp.all((out == 0.0) | (out == 1.0)))
    print("KERNEL_OK")
</pallas_src>

<mosaic_0001>
module attributes {stable_mosaic.version = 11 : i64} {
  func.func @_fused_net_kernel(%arg0: i32, %arg1: memref<18x512xf32, #tpu.memory_space<vmem>>, %arg2: memref<8x18xf32, #tpu.memory_space<vmem>>, %arg3: memref<8x1xf32, #tpu.memory_space<vmem>>, %arg4: memref<2048x10xf32, #tpu.memory_space<vmem>>, %arg5: memref<1x10xf32, #tpu.memory_space<vmem>>, %arg6: memref<2x10xf32, #tpu.memory_space<vmem>>) attributes {dimension_semantics = [#tpu.dimension_semantics<arbitrary>], iteration_bounds = array<i64: 1>, scalar_prefetch = 0 : i64, scratch_operands = 0 : i64, tpu.core_type = #tpu.core_type<tc>, window_params = [{pipeline_mode = #tpu.pipeline_mode<synchronous>, transform_indices = @transform_0, window_bounds = array<i64: 18, 512>}, {pipeline_mode = #tpu.pipeline_mode<synchronous>, transform_indices = @transform_1, window_bounds = array<i64: 8, 18>}, {pipeline_mode = #tpu.pipeline_mode<synchronous>, transform_indices = @transform_2, window_bounds = array<i64: 8, 1>}, {pipeline_mode = #tpu.pipeline_mode<synchronous>, transform_indices = @transform_3, window_bounds = array<i64: 2048, 10>}, {pipeline_mode = #tpu.pipeline_mode<synchronous>, transform_indices = @transform_4, window_bounds = array<i64: 1, 10>}, {pipeline_mode = #tpu.pipeline_mode<synchronous>, transform_indices = @transform_5, window_bounds = array<i64: 2, 10>}]} {
    %c0 = arith.constant 0 : index
    %c0_0 = arith.constant 0 : index
    %0 = vector.load %arg2[%c0, %c0_0] : memref<8x18xf32, #tpu.memory_space<vmem>>, vector<8x18xf32>
    %c0_1 = arith.constant 0 : index
    %c0_2 = arith.constant 0 : index
    %1 = vector.load %arg1[%c0_1, %c0_2] : memref<18x512xf32, #tpu.memory_space<vmem>>, vector<18x512xf32>
    %cst = arith.constant dense<0.000000e+00> : vector<8x512xf32>
    %2 = tpu.matmul %0, %1, %cst {dimension_numbers = #tpu.dot_dimension_numbers<[1], [0], [0], [1], [0, 0, 1, 1], [], []>} : vector<8x18xf32>, vector<18x512xf32>, vector<8x512xf32> -> vector<8x512xf32>
    %c0_3 = arith.constant 0 : index
    %c0_4 = arith.constant 0 : index
    %3 = vector.load %arg3[%c0_3, %c0_4] : memref<8x1xf32, #tpu.memory_space<vmem>>, vector<8x1xf32>
    %4 = vector.broadcast %3 : vector<8x1xf32> to vector<8x512xf32>
    %5 = arith.addf %2, %4 : vector<8x512xf32>
    %cst_5 = arith.constant 1.000000e+00 : f32
    %6 = vector.broadcast %cst_5 : f32 to vector<8x512xf32>
    %7 = arith.cmpf oge, %5, %6 : vector<8x512xf32>
    %8 = arith.extui %7 : vector<8x512xi1> to vector<8x512xi32>
    %9 = arith.sitofp %8 : vector<8x512xi32> to vector<8x512xf32>
    %c0_6 = arith.constant 0 : index
    %c0_7 = arith.constant 0 : index
    %10 = vector.load %arg5[%c0_6, %c0_7] : memref<1x10xf32, #tpu.memory_space<vmem>>, vector<1x10xf32>
    %c0_8 = arith.constant 0 : index
    %c0_9 = arith.constant 0 : index
    %11 = vector.load %arg5[%c0_8, %c0_9] : memref<1x10xf32, #tpu.memory_space<vmem>>, vector<1x10xf32>
    %c0_10 = arith.constant 0 : index
    %c0_11 = arith.constant 0 : index
    %12 = vector.load %arg4[%c0_10, %c0_11] : memref<2048x10xf32, #tpu.memory_space<vmem>>, vector<256x10xf32>
    %13 = vector.extract_strided_slice %9 {offsets = [0, 0], sizes = [1, 256], strides = [1, 1]} : vector<8x512xf32> to vector<1x256xf32>
    %cst_12 = arith.constant dense<0.000000e+00> : vector<1x10xf32>
    %14 = tpu.matmul %13, %12, %cst_12 {dimension_numbers = #tpu.dot_dimension_numbers<[1], [0], [0], [1], [0, 0, 1, 1], [], []>} : vector<1x256xf32>, vector<256x10xf32>, vector<1x10xf32> -> vector<1x10xf32>
    %15 = arith.addf %10, %14 : vector<1x10xf32>
    %16 = vector.extract_strided_slice %9 {offsets = [0, 256], sizes = [1, 256], strides = [1, 1]} : vector<8x512xf32> to vector<1x256xf32>
    %cst_13 = arith.constant dense<0.000000e+00> : vector<1x10xf32>
    %17 = tpu.matmul %16, %12, %cst_13 {dimension_numbers = #tpu.dot_dimension_numbers<[1], [0], [0], [1], [0, 0, 1, 1], [], []>} : vector<1x256xf32>, vector<256x10xf32>, vector<1x10xf32> -> vector<1x10xf32>
    %18 = arith.addf %11, %17 : vector<1x10xf32>
    %c256 = arith.constant 256 : index
    %c0_14 = arith.constant 0 : index
    %19 = vector.load %arg4[%c256, %c0_14] : memref<2048x10xf32, #tpu.memory_space<vmem>>, vector<256x10xf32>
    %20 = vector.extract_strided_slice %9 {offsets = [1, 0], sizes = [1, 256], strides = [1, 1]} : vector<8x512xf32> to vector<1x256xf32>
    %cst_15 = arith.constant dense<0.000000e+00> : vector<1x10xf32>
    %21 = tpu.matmul %20, %19, %cst_15 {dimension_numbers = #tpu.dot_dimension_numbers<[1], [0], [0], [1], [0, 0, 1, 1], [], []>} : vector<1x256xf32>, vector<256x10xf32>, vector<1x10xf32> -> vector<1x10xf32>
    %22 = arith.addf %15, %21 : vector<1x10xf32>
    %23 = vector.extract_strided_slice %9 {offsets = [1, 256], sizes = [1, 256], strides = [1, 1]} : vector<8x512xf32> to vector<1x256xf32>
    %cst_16 = arith.constant dense<0.000000e+00> : vector<1x10xf32>
    %24 = tpu.matmul %23, %19, %cst_16 {dimension_numbers = #tpu.dot_dimension_numbers<[1], [0], [0], [1], [0, 0, 1, 1], [], []>} : vector<1x256xf32>, vector<256x10xf32>, vector<1x10xf32> -> vector<1x10xf32>
    %25 = arith.addf %18, %24 : vector<1x10xf32>
    %c512 = arith.constant 512 : index
    %c0_17 = arith.constant 0 : index
    %26 = vector.load %arg4[%c512, %c0_17] : memref<2048x10xf32, #tpu.memory_space<vmem>>, vector<256x10xf32>
    %27 = vector.extract_strided_slice %9 {offsets = [2, 0], sizes = [1, 256], strides = [1, 1]} : vector<8x512xf32> to vector<1x256xf32>
    %cst_18 = arith.constant dense<0.000000e+00> : vector<1x10xf32>
    %28 = tpu.matmul %27, %26, %cst_18 {dimension_numbers = #tpu.dot_dimension_numbers<[1], [0], [0], [1], [0, 0, 1, 1], [], []>} : vector<1x256xf32>, vector<256x10xf32>, vector<1x10xf32> -> vector<1x10xf32>
    %29 = arith.addf %22, %28 : vector<1x10xf32>
    %30 = vector.extract_strided_slice %9 {offsets = [2, 256], sizes = [1, 256], strides = [1, 1]} : vector<8x512xf32> to vector<1x256xf32>
    %cst_19 = arith.constant dense<0.000000e+00> : vector<1x10xf32>
    %31 = tpu.matmul %30, %26, %cst_19 {dimension_numbers = #tpu.dot_dimension_numbers<[1], [0], [0], [1], [0, 0, 1, 1], [], []>} : vector<1x256xf32>, vector<256x10xf32>, vector<1x10xf32> -> vector<1x10xf32>
    %32 = arith.addf %25, %31 : vector<1x10xf32>
    %c768 = arith.constant 768 : index
    %c0_20 = arith.constant 0 : index
    %33 = vector.load %arg4[%c768, %c0_20] : memref<2048x10xf32, #tpu.memory_space<vmem>>, vector<256x10xf32>
    %34 = vector.extract_strided_slice %9 {offsets = [3, 0], sizes = [1, 256], strides = [1, 1]} : vector<8x512xf32> to vector<1x256xf32>
    %cst_21 = arith.constant dense<0.000000e+00> : vector<1x10xf32>
    %35 = tpu.matmul %34, %33, %cst_21 {dimension_numbers = #tpu.dot_dimension_numbers<[1], [0], [0], [1], [0, 0, 1, 1], [], []>} : vector<1x256xf32>, vector<256x10xf32>, vector<1x10xf32> -> vector<1x10xf32>
    %36 = arith.addf %29, %35 : vector<1x10xf32>
    %37 = vector.extract_strided_slice %9 {offsets = [3, 256], sizes = [1, 256], strides = [1, 1]} : vector<8x512xf32> to vector<1x256xf32>
    %cst_22 = arith.constant dense<0.000000e+00> : vector<1x10xf32>
    %38 = tpu.matmul %37, %33, %cst_22 {dimension_numbers = #tpu.dot_dimension_numbers<[1], [0], [0], [1], [0, 0, 1, 1], [], []>} : vector<1x256xf32>, vector<256x10xf32>, vector<1x10xf32> -> vector<1x10xf32>
    %39 = arith.addf %32, %38 : vector<1x10xf32>
    %c1024 = arith.constant 1024 : index
    %c0_23 = arith.constant 0 : index
    %40 = vector.load %arg4[%c1024, %c0_23] : memref<2048x10xf32, #tpu.memory_space<vmem>>, vector<256x10xf32>
    %41 = vector.extract_strided_slice %9 {offsets = [4, 0], sizes = [1, 256], strides = [1, 1]} : vector<8x512xf32> to vector<1x256xf32>
    %cst_24 = arith.constant dense<0.000000e+00> : vector<1x10xf32>
    %42 = tpu.matmul %41, %40, %cst_24 {dimension_numbers = #tpu.dot_dimension_numbers<[1], [0], [0], [1], [0, 0, 1, 1], [], []>} : vector<1x256xf32>, vector<256x10xf32>, vector<1x10xf32> -> vector<1x10xf32>
    %43 = arith.addf %36, %42 : vector<1x10xf32>
    %44 = vector.extract_strided_slice %9 {offsets = [4, 256], sizes = [1, 256], strides = [1, 1]} : vector<8x512xf32> to vector<1x256xf32>
    %cst_25 = arith.constant dense<0.000000e+00> : vector<1x10xf32>
    %45 = tpu.matmul %44, %40, %cst_25 {dimension_numbers = #tpu.dot_dimension_numbers<[1], [0], [0], [1], [0, 0, 1, 1], [], []>} : vector<1x256xf32>, vector<256x10xf32>, vector<1x10xf32> -> vector<1x10xf32>
    %46 = arith.addf %39, %45 : vector<1x10xf32>
    %c1280 = arith.constant 1280 : index
    %c0_26 = arith.constant 0 : index
    %47 = vector.load %arg4[%c1280, %c0_26] : memref<2048x10xf32, #tpu.memory_space<vmem>>, vector<256x10xf32>
    %48 = vector.extract_strided_slice %9 {offsets = [5, 0], sizes = [1, 256], strides = [1, 1]} : vector<8x512xf32> to vector<1x256xf32>
    %cst_27 = arith.constant dense<0.000000e+00> : vector<1x10xf32>
    %49 = tpu.matmul %48, %47, %cst_27 {dimension_numbers = #tpu.dot_dimension_numbers<[1], [0], [0], [1], [0, 0, 1, 1], [], []>} : vector<1x256xf32>, vector<256x10xf32>, vector<1x10xf32> -> vector<1x10xf32>
    %50 = arith.addf %43, %49 : vector<1x10xf32>
    %51 = vector.extract_strided_slice %9 {offsets = [5, 256], sizes = [1, 256], strides = [1, 1]} : vector<8x512xf32> to vector<1x256xf32>
    %cst_28 = arith.constant dense<0.000000e+00> : vector<1x10xf32>
    %52 = tpu.matmul %51, %47, %cst_28 {dimension_numbers = #tpu.dot_dimension_numbers<[1], [0], [0], [1], [0, 0, 1, 1], [], []>} : vector<1x256xf32>, vector<256x10xf32>, vector<1x10xf32> -> vector<1x10xf32>
    %53 = arith.addf %46, %52 : vector<1x10xf32>
    %c1536 = arith.constant 1536 : index
    %c0_29 = arith.constant 0 : index
    %54 = vector.load %arg4[%c1536, %c0_29] : memref<2048x10xf32, #tpu.memory_space<vmem>>, vector<256x10xf32>
    %55 = vector.extract_strided_slice %9 {offsets = [6, 0], sizes = [1, 256], strides = [1, 1]} : vector<8x512xf32> to vector<1x256xf32>
    %cst_30 = arith.constant dense<0.000000e+00> : vector<1x10xf32>
    %56 = tpu.matmul %55, %54, %cst_30 {dimension_numbers = #tpu.dot_dimension_numbers<[1], [0], [0], [1], [0, 0, 1, 1], [], []>} : vector<1x256xf32>, vector<256x10xf32>, vector<1x10xf32> -> vector<1x10xf32>
    %57 = arith.addf %50, %56 : vector<1x10xf32>
    %58 = vector.extract_strided_slice %9 {offsets = [6, 256], sizes = [1, 256], strides = [1, 1]} : vector<8x512xf32> to vector<1x256xf32>
    %cst_31 = arith.constant dense<0.000000e+00> : vector<1x10xf32>
    %59 = tpu.matmul %58, %54, %cst_31 {dimension_numbers = #tpu.dot_dimension_numbers<[1], [0], [0], [1], [0, 0, 1, 1], [], []>} : vector<1x256xf32>, vector<256x10xf32>, vector<1x10xf32> -> vector<1x10xf32>
    %60 = arith.addf %53, %59 : vector<1x10xf32>
    %c1792 = arith.constant 1792 : index
    %c0_32 = arith.constant 0 : index
    %61 = vector.load %arg4[%c1792, %c0_32] : memref<2048x10xf32, #tpu.memory_space<vmem>>, vector<256x10xf32>
    %62 = vector.extract_strided_slice %9 {offsets = [7, 0], sizes = [1, 256], strides = [1, 1]} : vector<8x512xf32> to vector<1x256xf32>
    %cst_33 = arith.constant dense<0.000000e+00> : vector<1x10xf32>
    %63 = tpu.matmul %62, %61, %cst_33 {dimension_numbers = #tpu.dot_dimension_numbers<[1], [0], [0], [1], [0, 0, 1, 1], [], []>} : vector<1x256xf32>, vector<256x10xf32>, vector<1x10xf32> -> vector<1x10xf32>
    %64 = arith.addf %57, %63 : vector<1x10xf32>
    %65 = vector.extract_strided_slice %9 {offsets = [7, 256], sizes = [1, 256], strides = [1, 1]} : vector<8x512xf32> to vector<1x256xf32>
    %cst_34 = arith.constant dense<0.000000e+00> : vector<1x10xf32>
    %66 = tpu.matmul %65, %61, %cst_34 {dimension_numbers = #tpu.dot_dimension_numbers<[1], [0], [0], [1], [0, 0, 1, 1], [], []>} : vector<1x256xf32>, vector<256x10xf32>, vector<1x10xf32> -> vector<1x10xf32>
    %67 = arith.addf %60, %66 : vector<1x10xf32>
    %cst_35 = arith.constant 1.000000e+00 : f32
    %68 = vector.broadcast %cst_35 : f32 to vector<1x10xf32>
    %69 = arith.cmpf oge, %64, %68 : vector<1x10xf32>
    %70 = arith.extui %69 : vector<1x10xi1> to vector<1x10xi32>
    %71 = arith.sitofp %70 : vector<1x10xi32> to vector<1x10xf32>
    %c0_36 = arith.constant 0 : index
    %c0_37 = arith.constant 0 : index
    %72 = vector.load %arg6[%c0_36, %c0_37] : memref<2x10xf32, #tpu.memory_space<vmem>>, vector<1x10xf32>
    tpu.vector_store %arg6[%c0_36, %c0_37], %71 {strides = array<i32>} : memref<2x10xf32, #tpu.memory_space<vmem>>, vector<1x10xf32>,
    %cst_38 = arith.constant 1.000000e+00 : f32
    %73 = vector.broadcast %cst_38 : f32 to vector<1x10xf32>
    %74 = arith.cmpf oge, %67, %73 : vector<1x10xf32>
    %75 = arith.extui %74 : vector<1x10xi1> to vector<1x10xi32>
    %76 = arith.sitofp %75 : vector<1x10xi32> to vector<1x10xf32>
    %c1 = arith.constant 1 : index
    %c0_39 = arith.constant 0 : index
    %77 = vector.load %arg6[%c1, %c0_39] : memref<2x10xf32, #tpu.memory_space<vmem>>, vector<1x10xf32>
    tpu.vector_store %arg6[%c1, %c0_39], %76 {strides = array<i32>} : memref<2x10xf32, #tpu.memory_space<vmem>>, vector<1x10xf32>,
    return
  }
  func.func @transform_0(%arg0: i32) -> (i32, i32) {
    %c0_i32 = arith.constant 0 : i32
    %c0_i32_0 = arith.constant 0 : i32
    %c0_i32_1 = arith.constant 0 : i32
    return %c0_i32, %c0_i32_0 : i32, i32
  }
  func.func @transform_1(%arg0: i32) -> (i32, i32) {
    %c0_i32 = arith.constant 0 : i32
    %c0_i32_0 = arith.constant 0 : i32
    %c0_i32_1 = arith.constant 0 : i32
    return %c0_i32, %c0_i32_0 : i32, i32
  }
  func.func @transform_2(%arg0: i32) -> (i32, i32) {
    %c0_i32 = arith.constant 0 : i32
    %c0_i32_0 = arith.constant 0 : i32
    %c0_i32_1 = arith.constant 0 : i32
    return %c0_i32, %c0_i32_0 : i32, i32
  }
  func.func @transform_3(%arg0: i32) -> (i32, i32) {
    %c0_i32 = arith.constant 0 : i32
    %c0_i32_0 = arith.constant 0 : i32
    %c0_i32_1 = arith.constant 0 : i32
    return %c0_i32, %c0_i32_0 : i32, i32
  }
  func.func @transform_4(%arg0: i32) -> (i32, i32) {
    %c0_i32 = arith.constant 0 : i32
    %c0_i32_0 = arith.constant 0 : i32
    %c0_i32_1 = arith.constant 0 : i32
    return %c0_i32, %c0_i32_0 : i32, i32
  }
  func.func @transform_5(%arg0: i32) -> (i32, i32) {
    %c0_i32 = arith.constant 0 : i32
    %c0_i32_0 = arith.constant 0 : i32
    %c0_i32_1 = arith.constant 0 : i32
    return %c0_i32, %c0_i32_0 : i32, i32
  }
}

</mosaic_0001>

<llo_original>
// kernel: net_forward.1
$region0: #{net_forward.1}
  #allocation0 [shape = 'u32[]', space=smem, size = 0x4, offset = 0x4, fixed_abs, tag = 'smem constant byte address 0x4 - core index']
  #allocation1 [shape = 'u32[144,128]{1,0:T(1,128)}', space=vmem, size = 0x12000, scoped, tag = 'internal scratch']
  %s0 = inlined_call_operand.vmem [shape: f32[18,512], index: 0, kind: input, shape index: {}]
  %s1 = inlined_call_operand.vmem [shape: f32[8,18], index: 1, kind: input, shape index: {}]
  %s2 = inlined_call_operand.vmem [shape: f32[8,1], index: 2, kind: input, shape index: {}]
  %s3 = inlined_call_operand.vmem [shape: f32[2048,10], index: 3, kind: input, shape index: {}]
  %s4 = inlined_call_operand.vmem [shape: f32[1,10], index: 4, kind: input, shape index: {}]
  %s5 = inlined_call_operand.hbm [shape: f32[2,10], index: 5, kind: output, shape index: {}]
  %s6 = sld [smem:[#allocation0]]
  $region30: #{net_forward.1} parent=0
    _
  %s8 = ssub.s32 1, %s6
  %s9 = scalar_select 0, %s8, %s6
  $region1: #{net_forward.1} parent=0
    #allocation2 [shape = 'u8[1024]{0}', space=vmem, size = 0x400, scoped, tag = 'output window, operand 0, single buffered']
    #allocation3 [shape = 's32[1]{0}', space=sflag, size = 0x4, scoped, tag = 'scoped memory for net_forward.1']
    %10 = vsyncpa [#allocation3], 0
    // Predicated region
    $region2: #{net_forward.1} parent=1 // pred_check
      _
    $region3: #{net_forward.1} parent=1 // pred_check_branch
      %12 = sbr.rel (0) target = $region5
    $region4: #{net_forward.1} parent=1 // pred_region
      _
    $region5: #{net_forward.1} parent=1 // pred_fallthru
      _
    // Predicated region
    $region6: #{net_forward.1} parent=1 // pred_check
      _
    $region7: #{net_forward.1} parent=1 // pred_check_branch
      %14 = sbr.rel (0) target = $region9
    $region8: #{net_forward.1} parent=1 // pred_region
      _
    $region9: #{net_forward.1} parent=1 // pred_fallthru
      _
    // Predicated region
    $region10: #{net_forward.1} parent=1 // pred_check
      _
    $region11: #{net_forward.1} parent=1 // pred_check_branch
      %16 = sbr.rel (0) target = $region13
    $region12: #{net_forward.1} parent=1 // pred_region
      _
    $region13: #{net_forward.1} parent=1 // pred_fallthru
      _
    // Predicated region
    $region14: #{net_forward.1} parent=1 // pred_check
      _
    $region15: #{net_forward.1} parent=1 // pred_check_branch
      %18 = sbr.rel (0) target = $region17
    $region16: #{net_forward.1} parent=1 // pred_region
      _
    $region17: #{net_forward.1} parent=1 // pred_fallthru
      _
    // Predicated region
    $region18: #{net_forward.1} parent=1 // pred_check
      _
    $region19: #{net_forward.1} parent=1 // pred_check_branch
      %20 = sbr.rel (0) target = $region21
    $region20: #{net_forward.1} parent=1 // pred_region
      _
    $region21: #{net_forward.1} parent=1 // pred_fallthru
      _
    %v21 = vld [vmem:[%s1] sm:$0xff]
    %v22 = vld [vmem:[%s0] sm:$0xff]
    %v23 = vld [vmem:[%s0 + $0x8] sm:$0xff]
    %v24 = vld [vmem:[%s0 + $0x10] sm:$0xff]
    %v25 = vld [vmem:[%s0 + $0x18] sm:$0xff]
    %v26 = vld [vmem:[%s0 + $0x20] sm:$0xff]
    %v27 = vld [vmem:[%s0 + $0x28] sm:$0xff]
    %v28 = vld [vmem:[%s0 + $0x30] sm:$0xff]
    %v29 = vld [vmem:[%s0 + $0x38] sm:$0xff]
    %v30 = vld [vmem:[%s0 + $0x40] sm:$0x3]
    %v31 = vld [vmem:[%s0 + $0x48] sm:$0x3]
    %v32 = vld [vmem:[%s0 + $0x50] sm:$0x3]
    %v33 = vld [vmem:[%s0 + $0x58] sm:$0x3]
    %v34 = vld [vmem:[%s2] sm:$0xff]
    %36 = vset.pattern.permute.xlu0 0
    %37 = vperm.xlu0 %36, %v34
    %v38 = vpop.permute.xlu0 %37
    %vm40 = vcmask 146432
    %v42 = vsel %vm40, %v21, 0
    %vm44 = vcmask 1041408
    %v46 = vsel %vm44, %v30, 0
    %v49 = vsel %vm44, %v31, 0
    %v52 = vsel %vm44, %v32, 0
    %v55 = vsel %vm44, %v33, 0
    %57 = vmatprep.subr.mxu0 %v23
    %58 = vmatpush1.msra.mxu0 %v22
    %59 = vmatprep.subr.mxu0 %v27
    %60 = vmatpush1.msra.mxu0 %v26
    %61 = vmatprep.subr.mxu0 %v49
    %62 = vmatpush1.msra.mxu0 %v46
    %63 = vmatprep.subr.mxu0 0.0
    %64 = vmatpush1.msra.mxu0 0.0
    %65 = vmatprep.subr.mxu0 0.0
    %66 = vmatpush1.msra.mxu0 0.0
    %67 = vmatprep.subr.mxu0 0.0
    %68 = vmatpush1.msra.mxu0 0.0
    %69 = vmatprep.subr.mxu0 0.0
    %70 = vmatpush1.msra.mxu0 0.0
    %71 = vmatprep.subr.mxu0 0.0
    %72 = vmatpush1.msra.mxu0 0.0
    %73 = vmatprep.subr.mxu0 0.0
    %74 = vmatpush1.msra.mxu0 0.0
    %75 = vmatprep.subr.mxu0 0.0
    %76 = vmatpush1.msra.mxu0 0.0
    %77 = vmatprep.subr.mxu0 0.0
    %78 = vmatpush1.msra.mxu0 0.0
    %79 = vmatprep.subr.mxu0 0.0
    %80 = vmatpush1.msra.mxu0 0.0
    %81 = vmatprep.subr.mxu0 0.0
    %82 = vmatpush1.msra.mxu0 0.0
    %83 = vmatprep.subr.mxu0 0.0
    %84 = vmatpush1.msra.mxu0 0.0
    %85 = vmatprep.subr.mxu0 0.0
    %86 = vmatpush1.msra.mxu0 0.0
    %87 = vmatprep.subr.mxu0 0.0
    %88 = vmatpush1.msra.mxu0 0.0
    %89 = vmatprep.subr.mxu0 0.0
    %90 = vmatpush1.msra.mxu0 0.0
    %91 = vmatprep.subr.mxu0 0.0
    %92 = vmatpush1.msra.mxu0 0.0
    %93 = vmatprep.subr.mxu0 0.0
    %94 = vmatpush1.msra.mxu0 0.0
    %95 = vmatprep.subr.mxu0 0.0
    %96 = vmatpush1.msra.mxu0 0.0
    %97 = vmatprep.subr.mxu0 0.0
    %98 = vmatpush1.msra.mxu0 0.0
    %99 = vmatprep.subr.mxu0 0.0
    %100 = vmatpush1.msra.mxu0 0.0
    %101 = vmatprep.subr.mxu0 0.0
    %102 = vmatpush1.msra.mxu0 0.0
    %103 = vmatprep.subr.mxu0 0.0
    %104 = vmatpush1.msra.mxu0 0.0
    %105 = vmatprep.subr.mxu0 0.0
    %106 = vmatpush1.msra.mxu0 0.0
    %107 = vmatprep.subr.mxu0 0.0
    %108 = vmatpush1.msra.mxu0 0.0
    %109 = vmatprep.subr.mxu0 0.0
    %110 = vmatpush1.msra.mxu0 0.0
    %111 = vmatprep.subr.mxu0 0.0
    %112 = vmatpush1.msra.mxu0 0.0
    %113 = vmatprep.subr.mxu0 0.0
    %114 = vmatpush1.msra.mxu0 0.0
    %115 = vmatprep.subr.mxu0 0.0
    %116 = vmatpush1.msra.mxu0 0.0
    %117 = vmatprep.subr.mxu0 0.0
    %118 = vmatpush1.msra.mxu0 0.0
    %119 = vmatprep.subr.mxu0 0.0
    %120 = vmatpush1.msra.mxu0 0.0
    %121 = vmatprep.mubr.f32.mxu0 0.0
    %122 = vmatmul.mubr.f32.gmra.mrb[0].mxu0 %v42
    %v123 = vpop.f32.mrb[0].mxu0
    %v124 = vadd.f32 %v38, %v123
    %v125 = vpop.f32.mrb[0].mxu0
    %v126 = vadd.f32 %v38, %v125
    %127 = vdwg.mxu0
    %128 = vmatprep.subr.mxu0 %v25
    %129 = vmatpush1.msra.mxu0 %v24
    %130 = vmatprep.subr.mxu0 %v29
    %131 = vmatpush1.msra.mxu0 %v28
    %132 = vmatprep.subr.mxu0 %v55
    %133 = vmatpush1.msra.mxu0 %v52
    %134 = vmatprep.subr.mxu0 0.0
    %135 = vmatpush1.msra.mxu0 0.0
    %136 = vmatprep.subr.mxu0 0.0
    %137 = vmatpush1.msra.mxu0 0.0
    %138 = vmatprep.subr.mxu0 0.0
    %139 = vmatpush1.msra.mxu0 0.0
    %140 = vmatprep.subr.mxu0 0.0
    %141 = vmatpush1.msra.mxu0 0.0
    %142 = vmatprep.subr.mxu0 0.0
    %143 = vmatpush1.msra.mxu0 0.0
    %144 = vmatprep.subr.mxu0 0.0
    %145 = vmatpush1.msra.mxu0 0.0
    %146 = vmatprep.subr.mxu0 0.0
    %147 = vmatpush1.msra.mxu0 0.0
    %148 = vmatprep.subr.mxu0 0.0
    %149 = vmatpush1.msra.mxu0 0.0
    %150 = vmatprep.subr.mxu0 0.0
    %151 = vmatpush1.msra.mxu0 0.0
    %152 = vmatprep.subr.mxu0 0.0
    %153 = vmatpush1.msra.mxu0 0.0
    %154 = vmatprep.subr.mxu0 0.0
    %155 = vmatpush1.msra.mxu0 0.0
    %156 = vmatprep.subr.mxu0 0.0
    %157 = vmatpush1.msra.mxu0 0.0
    %158 = vmatprep.subr.mxu0 0.0
    %159 = vmatpush1.msra.mxu0 0.0
    %160 = vmatprep.subr.mxu0 0.0
    %161 = vmatpush1.msra.mxu0 0.0
    %162 = vmatprep.subr.mxu0 0.0
    %163 = vmatpush1.msra.mxu0 0.0
    %164 = vmatprep.subr.mxu0 0.0
    %165 = vmatpush1.msra.mxu0 0.0
    %166 = vmatprep.subr.mxu0 0.0
    %167 = vmatpush1.msra.mxu0 0.0
    %168 = vmatprep.subr.mxu0 0.0
    %169 = vmatpush1.msra.mxu0 0.0
    %170 = vmatprep.subr.mxu0 0.0
    %171 = vmatpush1.msra.mxu0 0.0
    %172 = vmatprep.subr.mxu0 0.0
    %173 = vmatpush1.msra.mxu0 0.0
    %174 = vmatprep.subr.mxu0 0.0
    %175 = vmatpush1.msra.mxu0 0.0
    %176 = vmatprep.subr.mxu0 0.0
    %177 = vmatpush1.msra.mxu0 0.0
    %178 = vmatprep.subr.mxu0 0.0
    %179 = vmatpush1.msra.mxu0 0.0
    %180 = vmatprep.subr.mxu0 0.0
    %181 = vmatpush1.msra.mxu0 0.0
    %182 = vmatprep.subr.mxu0 0.0
    %183 = vmatpush1.msra.mxu0 0.0
    %184 = vmatprep.subr.mxu0 0.0
    %185 = vmatpush1.msra.mxu0 0.0
    %186 = vmatprep.subr.mxu0 0.0
    %187 = vmatpush1.msra.mxu0 0.0
    %188 = vmatprep.subr.mxu0 0.0
    %189 = vmatpush1.msra.mxu0 0.0
    %190 = vmatprep.subr.mxu0 0.0
    %191 = vmatpush1.msra.mxu0 0.0
    %192 = vmatprep.mubr.f32.mxu0 0.0
    %193 = vmatmul.mubr.f32.gmra.mrb[0].mxu0 %v42
    %v194 = vpop.f32.mrb[0].mxu0
    %v195 = vadd.f32 %v38, %v194
    %v196 = vpop.f32.mrb[0].mxu0
    %v197 = vadd.f32 %v38, %v196
    %198 = vdwg.mxu0
    %vm199 = vcmp.ge.f32.partialorder %v124, 1.0
    %vm200 = vcmp.ge.f32.partialorder %v126, 1.0
    %vm201 = vcmp.ge.f32.partialorder %v195, 1.0
    %vm202 = vcmp.ge.f32.partialorder %v197, 1.0
    %v203 = vsel %vm199, 1, 0
    %v204 = vsel %vm200, 1, 0
    %v205 = vsel %vm201, 1, 0
    %v206 = vsel %vm202, 1, 0
    %v207 = vcvt.s32.f32 %v203
    %v208 = vcvt.s32.f32 %v204
    %v209 = vcvt.s32.f32 %v205
    %v210 = vcvt.s32.f32 %v206
    %v211 = vld [vmem:[%s4] sm:$0x1]
    %v212 = vld [vmem:[%s3] sm:$0xff]
    %v213 = vld [vmem:[%s3 + $0x8] sm:$0xff]
    %v214 = vld [vmem:[%s3 + $0x10] sm:$0xff]
    %v215 = vld [vmem:[%s3 + $0x18] sm:$0xff]
    %v216 = vld [vmem:[%s3 + $0x20] sm:$0xff]
    %v217 = vld [vmem:[%s3 + $0x28] sm:$0xff]
    %v218 = vld [vmem:[%s3 + $0x30] sm:$0xff]
    %v219 = vld [vmem:[%s3 + $0x38] sm:$0xff]
    %v220 = vld [vmem:[%s3 + $0x40] sm:$0xff]
    %v221 = vld [vmem:[%s3 + $0x48] sm:$0xff]
    %v222 = vld [vmem:[%s3 + $0x50] sm:$0xff]
    %v223 = vld [vmem:[%s3 + $0x58] sm:$0xff]
    %v224 = vld [vmem:[%s3 + $0x60] sm:$0xff]
    %v225 = vld [vmem:[%s3 + $0x68] sm:$0xff]
    %v226 = vld [vmem:[%s3 + $0x70] sm:$0xff]
    %v227 = vld [vmem:[%s3 + $0x78] sm:$0xff]
    %v228 = vld [vmem:[%s3 + $0x80] sm:$0xff]
    %v229 = vld [vmem:[%s3 + $0x88] sm:$0xff]
    %v230 = vld [vmem:[%s3 + $0x90] sm:$0xff]
    %v231 = vld [vmem:[%s3 + $0x98] sm:$0xff]
    %v232 = vld [vmem:[%s3 + $0xa0] sm:$0xff]
    %v233 = vld [vmem:[%s3 + $0xa8] sm:$0xff]
    %v234 = vld [vmem:[%s3 + $0xb0] sm:$0xff]
    %v235 = vld [vmem:[%s3 + $0xb8] sm:$0xff]
    %v236 = vld [vmem:[%s3 + $0xc0] sm:$0xff]
    %v237 = vld [vmem:[%s3 + $0xc8] sm:$0xff]
    %v238 = vld [vmem:[%s3 + $0xd0] sm:$0xff]
    %v239 = vld [vmem:[%s3 + $0xd8] sm:$0xff]
    %v240 = vld [vmem:[%s3 + $0xe0] sm:$0xff]
    %v241 = vld [vmem:[%s3 + $0xe8] sm:$0xff]
    %v242 = vld [vmem:[%s3 + $0xf0] sm:$0xff]
    %v243 = vld [vmem:[%s3 + $0xf8] sm:$0xff]
    %244 = vmatprep.subr.mxu0 0.0
    %245 = vmatpush1.msra.mxu0 %v212
    %246 = vmatprep.subr.mxu0 0.0
    %247 = vmatpush1.msra.mxu0 %v213
    %248 = vmatprep.subr.mxu0 0.0
    %249 = vmatpush1.msra.mxu0 %v214
    %250 = vmatprep.subr.mxu0 0.0
    %251 = vmatpush1.msra.mxu0 %v215
    %252 = vmatprep.subr.mxu0 0.0
    %253 = vmatpush1.msra.mxu0 %v216
    %254 = vmatprep.subr.mxu0 0.0
    %255 = vmatpush1.msra.mxu0 %v217
    %256 = vmatprep.subr.mxu0 0.0
    %257 = vmatpush1.msra.mxu0 %v218
    %258 = vmatprep.subr.mxu0 0.0
    %259 = vmatpush1.msra.mxu0 %v219
    %260 = vmatprep.subr.mxu0 0.0
    %261 = vmatpush1.msra.mxu0 %v220
    %262 = vmatprep.subr.mxu0 0.0
    %263 = vmatpush1.msra.mxu0 %v221
    %264 = vmatprep.subr.mxu0 0.0
    %265 = vmatpush1.msra.mxu0 %v222
    %266 = vmatprep.subr.mxu0 0.0
    %267 = vmatpush1.msra.mxu0 %v223
    %268 = vmatprep.subr.mxu0 0.0
    %269 = vmatpush1.msra.mxu0 %v224
    %270 = vmatprep.subr.mxu0 0.0
    %271 = vmatpush1.msra.mxu0 %v225
    %272 = vmatprep.subr.mxu0 0.0
    %273 = vmatpush1.msra.mxu0 %v226
    %274 = vmatprep.subr.mxu0 0.0
    %275 = vmatpush1.msra.mxu0 %v227
    %276 = vmatprep.subr.mxu0 0.0
    %277 = vmatpush1.msra.mxu0 %v228
    %278 = vmatprep.subr.mxu0 0.0
    %279 = vmatpush1.msra.mxu0 %v229
    %280 = vmatprep.subr.mxu0 0.0
    %281 = vmatpush1.msra.mxu0 %v230
    %282 = vmatprep.subr.mxu0 0.0
    %283 = vmatpush1.msra.mxu0 %v231
    %284 = vmatprep.subr.mxu0 0.0
    %285 = vmatpush1.msra.mxu0 %v232
    %286 = vmatprep.subr.mxu0 0.0
    %287 = vmatpush1.msra.mxu0 %v233
    %288 = vmatprep.subr.mxu0 0.0
    %289 = vmatpush1.msra.mxu0 %v234
    %290 = vmatprep.subr.mxu0 0.0
    %291 = vmatpush1.msra.mxu0 %v235
    %292 = vmatprep.subr.mxu0 0.0
    %293 = vmatpush1.msra.mxu0 %v236
    %294 = vmatprep.subr.mxu0 0.0
    %295 = vmatpush1.msra.mxu0 %v237
    %296 = vmatprep.subr.mxu0 0.0
    %297 = vmatpush1.msra.mxu0 %v238
    %298 = vmatprep.subr.mxu0 0.0
    %299 = vmatpush1.msra.mxu0 %v239
    %300 = vmatprep.subr.mxu0 0.0
    %301 = vmatpush1.msra.mxu0 %v240
    %302 = vmatprep.subr.mxu0 0.0
    %303 = vmatpush1.msra.mxu0 %v241
    %304 = vmatprep.subr.mxu0 0.0
    %305 = vmatpush1.msra.mxu0 %v242
    %306 = vmatprep.subr.mxu0 0.0
    %307 = vmatpush1.msra.mxu0 %v243
    %308 = vmatprep.mubr.f32.mxu0 %v208
    %309 = vmatmul.mubr.f32.gmra.mrb[0].mxu0 %v207
    %v310 = vpop.f32.mrb[0].mxu0
    %v311 = vadd.f32 0.0, %v310
    %v312 = vpop.f32.mrb[0].mxu0
    %313 = vdwg.mxu0
    %v314 = vadd.f32 %v211, %v311
    %315 = vmatprep.subr.mxu0 0.0
    %316 = vmatpush1.msra.mxu0 %v212
    %317 = vmatprep.subr.mxu0 0.0
    %318 = vmatpush1.msra.mxu0 %v213
    %319 = vmatprep.subr.mxu0 0.0
    %320 = vmatpush1.msra.mxu0 %v214
    %321 = vmatprep.subr.mxu0 0.0
    %322 = vmatpush1.msra.mxu0 %v215
    %323 = vmatprep.subr.mxu0 0.0
    %324 = vmatpush1.msra.mxu0 %v216
    %325 = vmatprep.subr.mxu0 0.0
    %326 = vmatpush1.msra.mxu0 %v217
    %327 = vmatprep.subr.mxu0 0.0
    %328 = vmatpush1.msra.mxu0 %v218
    %329 = vmatprep.subr.mxu0 0.0
    %330 = vmatpush1.msra.mxu0 %v219
    %331 = vmatprep.subr.mxu0 0.0
    %332 = vmatpush1.msra.mxu0 %v220
    %333 = vmatprep.subr.mxu0 0.0
    %334 = vmatpush1.msra.mxu0 %v221
    %335 = vmatprep.subr.mxu0 0.0
    %336 = vmatpush1.msra.mxu0 %v222
    %337 = vmatprep.subr.mxu0 0.0
    %338 = vmatpush1.msra.mxu0 %v223
    %339 = vmatprep.subr.mxu0 0.0
    %340 = vmatpush1.msra.mxu0 %v224
    %341 = vmatprep.subr.mxu0 0.0
    %342 = vmatpush1.msra.mxu0 %v225
    %343 = vmatprep.subr.mxu0 0.0
    %344 = vmatpush1.msra.mxu0 %v226
    %345 = vmatprep.subr.mxu0 0.0
    %346 = vmatpush1.msra.mxu0 %v227
    %347 = vmatprep.subr.mxu0 0.0
    %348 = vmatpush1.msra.mxu0 %v228
    %349 = vmatprep.subr.mxu0 0.0
    %350 = vmatpush1.msra.mxu0 %v229
    %351 = vmatprep.subr.mxu0 0.0
    %352 = vmatpush1.msra.mxu0 %v230
    %353 = vmatprep.subr.mxu0 0.0
    %354 = vmatpush1.msra.mxu0 %v231
    %355 = vmatprep.subr.mxu0 0.0
    %356 = vmatpush1.msra.mxu0 %v232
    %357 = vmatprep.subr.mxu0 0.0
    %358 = vmatpush1.msra.mxu0 %v233
    %359 = vmatprep.subr.mxu0 0.0
    %360 = vmatpush1.msra.mxu0 %v234
    %361 = vmatprep.subr.mxu0 0.0
    %362 = vmatpush1.msra.mxu0 %v235
    %363 = vmatprep.subr.mxu0 0.0
    %364 = vmatpush1.msra.mxu0 %v236
    %365 = vmatprep.subr.mxu0 0.0
    %366 = vmatpush1.msra.mxu0 %v237
    %367 = vmatprep.subr.mxu0 0.0
    %368 = vmatpush1.msra.mxu0 %v238
    %369 = vmatprep.subr.mxu0 0.0
    %370 = vmatpush1.msra.mxu0 %v239
    %371 = vmatprep.subr.mxu0 0.0
    %372 = vmatpush1.msra.mxu0 %v240
    %373 = vmatprep.subr.mxu0 0.0
    %374 = vmatpush1.msra.mxu0 %v241
    %375 = vmatprep.subr.mxu0 0.0
    %376 = vmatpush1.msra.mxu0 %v242
    %377 = vmatprep.subr.mxu0 0.0
    %378 = vmatpush1.msra.mxu0 %v243
    %379 = vmatprep.mubr.f32.mxu0 %v210
    %380 = vmatmul.mubr.f32.gmra.mrb[0].mxu0 %v209
    %v381 = vpop.f32.mrb[0].mxu0
    %v382 = vadd.f32 0.0, %v381
    %v383 = vpop.f32.mrb[0].mxu0
    %384 = vdwg.mxu0
    %v385 = vadd.f32 %v211, %v382
    %v386 = vld [vmem:[%s3 + $0x100] sm:$0xff]
    %v387 = vld [vmem:[%s3 + $0x108] sm:$0xff]
    %v388 = vld [vmem:[%s3 + $0x110] sm:$0xff]
    %v389 = vld [vmem:[%s3 + $0x118] sm:$0xff]
    %v390 = vld [vmem:[%s3 + $0x120] sm:$0xff]
    %v391 = vld [vmem:[%s3 + $0x128] sm:$0xff]
    %v392 = vld [vmem:[%s3 + $0x130] sm:$0xff]
    %v393 = vld [vmem:[%s3 + $0x138] sm:$0xff]
    %v394 = vld [vmem:[%s3 + $0x140] sm:$0xff]
    %v395 = vld [vmem:[%s3 + $0x148] sm:$0xff]
    %v396 = vld [vmem:[%s3 + $0x150] sm:$0xff]
    %v397 = vld [vmem:[%s3 + $0x158] sm:$0xff]
    %v398 = vld [vmem:[%s3 + $0x160] sm:$0xff]
    %v399 = vld [vmem:[%s3 + $0x168] sm:$0xff]
    %v400 = vld [vmem:[%s3 + $0x170] sm:$0xff]
    %v401 = vld [vmem:[%s3 + $0x178] sm:$0xff]
    %v402 = vld [vmem:[%s3 + $0x180] sm:$0xff]
    %v403 = vld [vmem:[%s3 + $0x188] sm:$0xff]
    %v404 = vld [vmem:[%s3 + $0x190] sm:$0xff]
    %v405 = vld [vmem:[%s3 + $0x198] sm:$0xff]
    %v406 = vld [vmem:[%s3 + $0x1a0] sm:$0xff]
    %v407 = vld [vmem:[%s3 + $0x1a8] sm:$0xff]
    %v408 = vld [vmem:[%s3 + $0x1b0] sm:$0xff]
    %v409 = vld [vmem:[%s3 + $0x1b8] sm:$0xff]
    %v410 = vld [vmem:[%s3 + $0x1c0] sm:$0xff]
    %v411 = vld [vmem:[%s3 + $0x1c8] sm:$0xff]
    %v412 = vld [vmem:[%s3 + $0x1d0] sm:$0xff]
    %v413 = vld [vmem:[%s3 + $0x1d8] sm:$0xff]
    %v414 = vld [vmem:[%s3 + $0x1e0] sm:$0xff]
    %v415 = vld [vmem:[%s3 + $0x1e8] sm:$0xff]
    %v416 = vld [vmem:[%s3 + $0x1f0] sm:$0xff]
    %v417 = vld [vmem:[%s3 + $0x1f8] sm:$0xff]
    %v420 = vrot.slane %v207, 1
    %v421 = vrot.slane %v208, 1
    %424 = vmatprep.subr.mxu0 0.0
    %425 = vmatpush1.msra.mxu0 %v386
    %426 = vmatprep.subr.mxu0 0.0
    %427 = vmatpush1.msra.mxu0 %v387
    %428 = vmatprep.subr.mxu0 0.0
    %429 = vmatpush1.msra.mxu0 %v388
    %430 = vmatprep.subr.mxu0 0.0
    %431 = vmatpush1.msra.mxu0 %v389
    %432 = vmatprep.subr.mxu0 0.0
    %433 = vmatpush1.msra.mxu0 %v390
    %434 = vmatprep.subr.mxu0 0.0
    %435 = vmatpush1.msra.mxu0 %v391
    %436 = vmatprep.subr.mxu0 0.0
    %437 = vmatpush1.msra.mxu0 %v392
    %438 = vmatprep.subr.mxu0 0.0
    %439 = vmatpush1.msra.mxu0 %v393
    %440 = vmatprep.subr.mxu0 0.0
    %441 = vmatpush1.msra.mxu0 %v394
    %442 = vmatprep.subr.mxu0 0.0
    %443 = vmatpush1.msra.mxu0 %v395
    %444 = vmatprep.subr.mxu0 0.0
    %445 = vmatpush1.msra.mxu0 %v396
    %446 = vmatprep.subr.mxu0 0.0
    %447 = vmatpush1.msra.mxu0 %v397
    %448 = vmatprep.subr.mxu0 0.0
    %449 = vmatpush1.msra.mxu0 %v398
    %450 = vmatprep.subr.mxu0 0.0
    %451 = vmatpush1.msra.mxu0 %v399
    %452 = vmatprep.subr.mxu0 0.0
    %453 = vmatpush1.msra.mxu0 %v400
    %454 = vmatprep.subr.mxu0 0.0
    %455 = vmatpush1.msra.mxu0 %v401
    %456 = vmatprep.subr.mxu0 0.0
    %457 = vmatpush1.msra.mxu0 %v402
    %458 = vmatprep.subr.mxu0 0.0
    %459 = vmatpush1.msra.mxu0 %v403
    %460 = vmatprep.subr.mxu0 0.0
    %461 = vmatpush1.msra.mxu0 %v404
    %462 = vmatprep.subr.mxu0 0.0
    %463 = vmatpush1.msra.mxu0 %v405
    %464 = vmatprep.subr.mxu0 0.0
    %465 = vmatpush1.msra.mxu0 %v406
    %466 = vmatprep.subr.mxu0 0.0
    %467 = vmatpush1.msra.mxu0 %v407
    %468 = vmatprep.subr.mxu0 0.0
    %469 = vmatpush1.msra.mxu0 %v408
    %470 = vmatprep.subr.mxu0 0.0
    %471 = vmatpush1.msra.mxu0 %v409
    %472 = vmatprep.subr.mxu0 0.0
    %473 = vmatpush1.msra.mxu0 %v410
    %474 = vmatprep.subr.mxu0 0.0
    %475 = vmatpush1.msra.mxu0 %v411
    %476 = vmatprep.subr.mxu0 0.0
    %477 = vmatpush1.msra.mxu0 %v412
    %478 = vmatprep.subr.mxu0 0.0
    %479 = vmatpush1.msra.mxu0 %v413
    %480 = vmatprep.subr.mxu0 0.0
    %481 = vmatpush1.msra.mxu0 %v414
    %482 = vmatprep.subr.mxu0 0.0
    %483 = vmatpush1.msra.mxu0 %v415
    %484 = vmatprep.subr.mxu0 0.0
    %485 = vmatpush1.msra.mxu0 %v416
    %486 = vmatprep.subr.mxu0 0.0
    %487 = vmatpush1.msra.mxu0 %v417
    %488 = vmatprep.mubr.f32.mxu0 %v421
    %489 = vmatmul.mubr.f32.gmra.mrb[0].mxu0 %v420
    %v490 = vpop.f32.mrb[0].mxu0
    %v491 = vadd.f32 0.0, %v490
    %v492 = vpop.f32.mrb[0].mxu0
    %493 = vdwg.mxu0
    %v494 = vadd.f32 %v314, %v491
    %v497 = vrot.slane %v209, 1
    %v498 = vrot.slane %v210, 1
    %501 = vmatprep.subr.mxu0 0.0
    %502 = vmatpush1.msra.mxu0 %v386
    %503 = vmatprep.subr.mxu0 0.0
    %504 = vmatpush1.msra.mxu0 %v387
    %505 = vmatprep.subr.mxu0 0.0
    %506 = vmatpush1.msra.mxu0 %v388
    %507 = vmatprep.subr.mxu0 0.0
    %508 = vmatpush1.msra.mxu0 %v389
    %509 = vmatprep.subr.mxu0 0.0
    %510 = vmatpush1.msra.mxu0 %v390
    %511 = vmatprep.subr.mxu0 0.0
    %512 = vmatpush1.msra.mxu0 %v391
    %513 = vmatprep.subr.mxu0 0.0
    %514 = vmatpush1.msra.mxu0 %v392
    %515 = vmatprep.subr.mxu0 0.0
    %516 = vmatpush1.msra.mxu0 %v393
    %517 = vmatprep.subr.mxu0 0.0
    %518 = vmatpush1.msra.mxu0 %v394
    %519 = vmatprep.subr.mxu0 0.0
    %520 = vmatpush1.msra.mxu0 %v395
    %521 = vmatprep.subr.mxu0 0.0
    %522 = vmatpush1.msra.mxu0 %v396
    %523 = vmatprep.subr.mxu0 0.0
    %524 = vmatpush1.msra.mxu0 %v397
    %525 = vmatprep.subr.mxu0 0.0
    %526 = vmatpush1.msra.mxu0 %v398
    %527 = vmatprep.subr.mxu0 0.0
    %528 = vmatpush1.msra.mxu0 %v399
    %529 = vmatprep.subr.mxu0 0.0
    %530 = vmatpush1.msra.mxu0 %v400
    %531 = vmatprep.subr.mxu0 0.0
    %532 = vmatpush1.msra.mxu0 %v401
    %533 = vmatprep.subr.mxu0 0.0
    %534 = vmatpush1.msra.mxu0 %v402
    %535 = vmatprep.subr.mxu0 0.0
    %536 = vmatpush1.msra.mxu0 %v403
    %537 = vmatprep.subr.mxu0 0.0
    %538 = vmatpush1.msra.mxu0 %v404
    %539 = vmatprep.subr.mxu0 0.0
    %540 = vmatpush1.msra.mxu0 %v405
    %541 = vmatprep.subr.mxu0 0.0
    %542 = vmatpush1.msra.mxu0 %v406
    %543 = vmatprep.subr.mxu0 0.0
    %544 = vmatpush1.msra.mxu0 %v407
    %545 = vmatprep.subr.mxu0 0.0
    %546 = vmatpush1.msra.mxu0 %v408
    %547 = vmatprep.subr.mxu0 0.0
    %548 = vmatpush1.msra.mxu0 %v409
    %549 = vmatprep.subr.mxu0 0.0
    %550 = vmatpush1.msra.mxu0 %v410
    %551 = vmatprep.subr.mxu0 0.0
    %552 = vmatpush1.msra.mxu0 %v411
    %553 = vmatprep.subr.mxu0 0.0
    %554 = vmatpush1.msra.mxu0 %v412
    %555 = vmatprep.subr.mxu0 0.0
    %556 = vmatpush1.msra.mxu0 %v413
    %557 = vmatprep.subr.mxu0 0.0
    %558 = vmatpush1.msra.mxu0 %v414
    %559 = vmatprep.subr.mxu0 0.0
    %560 = vmatpush1.msra.mxu0 %v415
    %561 = vmatprep.subr.mxu0 0.0
    %562 = vmatpush1.msra.mxu0 %v416
    %563 = vmatprep.subr.mxu0 0.0
    %564 = vmatpush1.msra.mxu0 %v417
    %565 = vmatprep.mubr.f32.mxu0 %v498
    %566 = vmatmul.mubr.f32.gmra.mrb[0].mxu0 %v497
    %v567 = vpop.f32.mrb[0].mxu0
    %v568 = vadd.f32 0.0, %v567
    %v569 = vpop.f32.mrb[0].mxu0
    %570 = vdwg.mxu0
    %v571 = vadd.f32 %v385, %v568
    %v572 = vld [vmem:[%s3 + $0x200] sm:$0xff]
    %v573 = vld [vmem:[%s3 + $0x208] sm:$0xff]
    %v574 = vld [vmem:[%s3 + $0x210] sm:$0xff]
    %v575 = vld [vmem:[%s3 + $0x218] sm:$0xff]
    %v576 = vld [vmem:[%s3 + $0x220] sm:$0xff]
    %v577 = vld [vmem:[%s3 + $0x228] sm:$0xff]
    %v578 = vld [vmem:[%s3 + $0x230] sm:$0xff]
    %v579 = vld [vmem:[%s3 + $0x238] sm:$0xff]
    %v580 = vld [vmem:[%s3 + $0x240] sm:$0xff]
    %v581 = vld [vmem:[%s3 + $0x248] sm:$0xff]
    %v582 = vld [vmem:[%s3 + $0x250] sm:$0xff]
    %v583 = vld [vmem:[%s3 + $0x258] sm:$0xff]
    %v584 = vld [vmem:[%s3 + $0x260] sm:$0xff]
    %v585 = vld [vmem:[%s3 + $0x268] sm:$0xff]
    %v586 = vld [vmem:[%s3 + $0x270] sm:$0xff]
    %v587 = vld [vmem:[%s3 + $0x278] sm:$0xff]
    %v588 = vld [vmem:[%s3 + $0x280] sm:$0xff]
    %v589 = vld [vmem:[%s3 + $0x288] sm:$0xff]
    %v590 = vld [vmem:[%s3 + $0x290] sm:$0xff]
    %v591 = vld [vmem:[%s3 + $0x298] sm:$0xff]
    %v592 = vld [vmem:[%s3 + $0x2a0] sm:$0xff]
    %v593 = vld [vmem:[%s3 + $0x2a8] sm:$0xff]
    %v594 = vld [vmem:[%s3 + $0x2b0] sm:$0xff]
    %v595 = vld [vmem:[%s3 + $0x2b8] sm:$0xff]
    %v596 = vld [vmem:[%s3 + $0x2c0] sm:$0xff]
    %v597 = vld [vmem:[%s3 + $0x2c8] sm:$0xff]
    %v598 = vld [vmem:[%s3 + $0x2d0] sm:$0xff]
    %v599 = vld [vmem:[%s3 + $0x2d8] sm:$0xff]
    %v600 = vld [vmem:[%s3 + $0x2e0] sm:$0xff]
    %v601 = vld [vmem:[%s3 + $0x2e8] sm:$0xff]
    %v602 = vld [vmem:[%s3 + $0x2f0] sm:$0xff]
    %v603 = vld [vmem:[%s3 + $0x2f8] sm:$0xff]
    %v604 = vrot.slane %v207, 2
    %v605 = vrot.slane %v208, 2
    %608 = vmatprep.subr.mxu0 0.0
    %609 = vmatpush1.msra.mxu0 %v572
    %610 = vmatprep.subr.mxu0 0.0
    %611 = vmatpush1.msra.mxu0 %v573
    %612 = vmatprep.subr.mxu0 0.0
    %613 = vmatpush1.msra.mxu0 %v574
    %614 = vmatprep.subr.mxu0 0.0
    %615 = vmatpush1.msra.mxu0 %v575
    %616 = vmatprep.subr.mxu0 0.0
    %617 = vmatpush1.msra.mxu0 %v576
    %618 = vmatprep.subr.mxu0 0.0
    %619 = vmatpush1.msra.mxu0 %v577
    %620 = vmatprep.subr.mxu0 0.0
    %621 = vmatpush1.msra.mxu0 %v578
    %622 = vmatprep.subr.mxu0 0.0
    %623 = vmatpush1.msra.mxu0 %v579
    %624 = vmatprep.subr.mxu0 0.0
    %625 = vmatpush1.msra.mxu0 %v580
    %626 = vmatprep.subr.mxu0 0.0
    %627 = vmatpush1.msra.mxu0 %v581
    %628 = vmatprep.subr.mxu0 0.0
    %629 = vmatpush1.msra.mxu0 %v582
    %630 = vmatprep.subr.mxu0 0.0
    %631 = vmatpush1.msra.mxu0 %v583
    %632 = vmatprep.subr.mxu0 0.0
    %633 = vmatpush1.msra.mxu0 %v584
    %634 = vmatprep.subr.mxu0 0.0
    %635 = vmatpush1.msra.mxu0 %v585
    %636 = vmatprep.subr.mxu0 0.0
    %637 = vmatpush1.msra.mxu0 %v586
    %638 = vmatprep.subr.mxu0 0.0
    %639 = vmatpush1.msra.mxu0 %v587
    %640 = vmatprep.subr.mxu0 0.0
    %641 = vmatpush1.msra.mxu0 %v588
    %642 = vmatprep.subr.mxu0 0.0
    %643 = vmatpush1.msra.mxu0 %v589
    %644 = vmatprep.subr.mxu0 0.0
    %645 = vmatpush1.msra.mxu0 %v590
    %646 = vmatprep.subr.mxu0 0.0
    %647 = vmatpush1.msra.mxu0 %v591
    %648 = vmatprep.subr.mxu0 0.0
    %649 = vmatpush1.msra.mxu0 %v592
    %650 = vmatprep.subr.mxu0 0.0
    %651 = vmatpush1.msra.mxu0 %v593
    %652 = vmatprep.subr.mxu0 0.0
    %653 = vmatpush1.msra.mxu0 %v594
    %654 = vmatprep.subr.mxu0 0.0
    %655 = vmatpush1.msra.mxu0 %v595
    %656 = vmatprep.subr.mxu0 0.0
    %657 = vmatpush1.msra.mxu0 %v596
    %658 = vmatprep.subr.mxu0 0.0
    %659 = vmatpush1.msra.mxu0 %v597
    %660 = vmatprep.subr.mxu0 0.0
    %661 = vmatpush1.msra.mxu0 %v598
    %662 = vmatprep.subr.mxu0 0.0
    %663 = vmatpush1.msra.mxu0 %v599
    %664 = vmatprep.subr.mxu0 0.0
    %665 = vmatpush1.msra.mxu0 %v600
    %666 = vmatprep.subr.mxu0 0.0
    %667 = vmatpush1.msra.mxu0 %v601
    %668 = vmatprep.subr.mxu0 0.0
    %669 = vmatpush1.msra.mxu0 %v602
    %670 = vmatprep.subr.mxu0 0.0
    %671 = vmatpush1.msra.mxu0 %v603
    %672 = vmatprep.mubr.f32.mxu0 %v605
    %673 = vmatmul.mubr.f32.gmra.mrb[0].mxu0 %v604
    %v674 = vpop.f32.mrb[0].mxu0
    %v675 = vadd.f32 0.0, %v674
    %v676 = vpop.f32.mrb[0].mxu0
    %677 = vdwg.mxu0
    %v678 = vadd.f32 %v494, %v675
    %v679 = vrot.slane %v209, 2
    %v680 = vrot.slane %v210, 2
    %683 = vmatprep.subr.mxu0 0.0
    %684 = vmatpush1.msra.mxu0 %v572
    %685 = vmatprep.subr.mxu0 0.0
    %686 = vmatpush1.msra.mxu0 %v573
    %687 = vmatprep.subr.mxu0 0.0
    %688 = vmatpush1.msra.mxu0 %v574
    %689 = vmatprep.subr.mxu0 0.0
    %690 = vmatpush1.msra.mxu0 %v575
    %691 = vmatprep.subr.mxu0 0.0
    %692 = vmatpush1.msra.mxu0 %v576
    %693 = vmatprep.subr.mxu0 0.0
    %694 = vmatpush1.msra.mxu0 %v577
    %695 = vmatprep.subr.mxu0 0.0
    %696 = vmatpush1.msra.mxu0 %v578
    %697 = vmatprep.subr.mxu0 0.0
    %698 = vmatpush1.msra.mxu0 %v579
    %699 = vmatprep.subr.mxu0 0.0
    %700 = vmatpush1.msra.mxu0 %v580
    %701 = vmatprep.subr.mxu0 0.0
    %702 = vmatpush1.msra.mxu0 %v581
    %703 = vmatprep.subr.mxu0 0.0
    %704 = vmatpush1.msra.mxu0 %v582
    %705 = vmatprep.subr.mxu0 0.0
    %706 = vmatpush1.msra.mxu0 %v583
    %707 = vmatprep.subr.mxu0 0.0
    %708 = vmatpush1.msra.mxu0 %v584
    %709 = vmatprep.subr.mxu0 0.0
    %710 = vmatpush1.msra.mxu0 %v585
    %711 = vmatprep.subr.mxu0 0.0
    %712 = vmatpush1.msra.mxu0 %v586
    %713 = vmatprep.subr.mxu0 0.0
    %714 = vmatpush1.msra.mxu0 %v587
    %715 = vmatprep.subr.mxu0 0.0
    %716 = vmatpush1.msra.mxu0 %v588
    %717 = vmatprep.subr.mxu0 0.0
    %718 = vmatpush1.msra.mxu0 %v589
    %719 = vmatprep.subr.mxu0 0.0
    %720 = vmatpush1.msra.mxu0 %v590
    %721 = vmatprep.subr.mxu0 0.0
    %722 = vmatpush1.msra.mxu0 %v591
    %723 = vmatprep.subr.mxu0 0.0
    %724 = vmatpush1.msra.mxu0 %v592
    %725 = vmatprep.subr.mxu0 0.0
    %726 = vmatpush1.msra.mxu0 %v593
    %727 = vmatprep.subr.mxu0 0.0
    %728 = vmatpush1.msra.mxu0 %v594
    %729 = vmatprep.subr.mxu0 0.0
    %730 = vmatpush1.msra.mxu0 %v595
    %731 = vmatprep.subr.mxu0 0.0
    %732 = vmatpush1.msra.mxu0 %v596
    %733 = vmatprep.subr.mxu0 0.0
    %734 = vmatpush1.msra.mxu0 %v597
    %735 = vmatprep.subr.mxu0 0.0
    %736 = vmatpush1.msra.mxu0 %v598
    %737 = vmatprep.subr.mxu0 0.0
    %738 = vmatpush1.msra.mxu0 %v599
    %739 = vmatprep.subr.mxu0 0.0
    %740 = vmatpush1.msra.mxu0 %v600
    %741 = vmatprep.subr.mxu0 0.0
    %742 = vmatpush1.msra.mxu0 %v601
    %743 = vmatprep.subr.mxu0 0.0
    %744 = vmatpush1.msra.mxu0 %v602
    %745 = vmatprep.subr.mxu0 0.0
    %746 = vmatpush1.msra.mxu0 %v603
    %747 = vmatprep.mubr.f32.mxu0 %v680
    %748 = vmatmul.mubr.f32.gmra.mrb[0].mxu0 %v679
    %v749 = vpop.f32.mrb[0].mxu0
    %v750 = vadd.f32 0.0, %v749
    %v751 = vpop.f32.mrb[0].mxu0
    %752 = vdwg.mxu0
    %v753 = vadd.f32 %v571, %v750
    %v754 = vld [vmem:[%s3 + $0x300] sm:$0xff]
    %v755 = vld [vmem:[%s3 + $0x308] sm:$0xff]
    %v756 = vld [vmem:[%s3 + $0x310] sm:$0xff]
    %v757 = vld [vmem:[%s3 + $0x318] sm:$0xff]
    %v758 = vld [vmem:[%s3 + $0x320] sm:$0xff]
    %v759 = vld [vmem:[%s3 + $0x328] sm:$0xff]
    %v760 = vld [vmem:[%s3 + $0x330] sm:$0xff]
    %v761 = vld [vmem:[%s3 + $0x338] sm:$0xff]
    %v762 = vld [vmem:[%s3 + $0x340] sm:$0xff]
    %v763 = vld [vmem:[%s3 + $0x348] sm:$0xff]
    %v764 = vld [vmem:[%s3 + $0x350] sm:$0xff]
    %v765 = vld [vmem:[%s3 + $0x358] sm:$0xff]
    %v766 = vld [vmem:[%s3 + $0x360] sm:$0xff]
    %v767 = vld [vmem:[%s3 + $0x368] sm:$0xff]
    %v768 = vld [vmem:[%s3 + $0x370] sm:$0xff]
    %v769 = vld [vmem:[%s3 + $0x378] sm:$0xff]
    %v770 = vld [vmem:[%s3 + $0x380] sm:$0xff]
    %v771 = vld [vmem:[%s3 + $0x388] sm:$0xff]
    %v772 = vld [vmem:[%s3 + $0x390] sm:$0xff]
    %v773 = vld [vmem:[%s3 + $0x398] sm:$0xff]
    %v774 = vld [vmem:[%s3 + $0x3a0] sm:$0xff]
    %v775 = vld [vmem:[%s3 + $0x3a8] sm:$0xff]
    %v776 = vld [vmem:[%s3 + $0x3b0] sm:$0xff]
    %v777 = vld [vmem:[%s3 + $0x3b8] sm:$0xff]
    %v778 = vld [vmem:[%s3 + $0x3c0] sm:$0xff]
    %v779 = vld [vmem:[%s3 + $0x3c8] sm:$0xff]
    %v780 = vld [vmem:[%s3 + $0x3d0] sm:$0xff]
    %v781 = vld [vmem:[%s3 + $0x3d8] sm:$0xff]
    %v782 = vld [vmem:[%s3 + $0x3e0] sm:$0xff]
    %v783 = vld [vmem:[%s3 + $0x3e8] sm:$0xff]
    %v784 = vld [vmem:[%s3 + $0x3f0] sm:$0xff]
    %v785 = vld [vmem:[%s3 + $0x3f8] sm:$0xff]
    %v786 = vrot.slane %v207, 3
    %v787 = vrot.slane %v208, 3
    %790 = vmatprep.subr.mxu0 0.0
    %791 = vmatpush1.msra.mxu0 %v754
    %792 = vmatprep.subr.mxu0 0.0
    %793 = vmatpush1.msra.mxu0 %v755
    %794 = vmatprep.subr.mxu0 0.0
    %795 = vmatpush1.msra.mxu0 %v756
    %796 = vmatprep.subr.mxu0 0.0
    %797 = vmatpush1.msra.mxu0 %v757
    %798 = vmatprep.subr.mxu0 0.0
    %799 = vmatpush1.msra.mxu0 %v758
    %800 = vmatprep.subr.mxu0 0.0
    %801 = vmatpush1.msra.mxu0 %v759
    %802 = vmatprep.subr.mxu0 0.0
    %803 = vmatpush1.msra.mxu0 %v760
    %804 = vmatprep.subr.mxu0 0.0
    %805 = vmatpush1.msra.mxu0 %v761
    %806 = vmatprep.subr.mxu0 0.0
    %807 = vmatpush1.msra.mxu0 %v762
    %808 = vmatprep.subr.mxu0 0.0
    %809 = vmatpush1.msra.mxu0 %v763
    %810 = vmatprep.subr.mxu0 0.0
    %811 = vmatpush1.msra.mxu0 %v764
    %812 = vmatprep.subr.mxu0 0.0
    %813 = vmatpush1.msra.mxu0 %v765
    %814 = vmatprep.subr.mxu0 0.0
    %815 = vmatpush1.msra.mxu0 %v766
    %816 = vmatprep.subr.mxu0 0.0
    %817 = vmatpush1.msra.mxu0 %v767
    %818 = vmatprep.subr.mxu0 0.0
    %819 = vmatpush1.msra.mxu0 %v768
    %820 = vmatprep.subr.mxu0 0.0
    %821 = vmatpush1.msra.mxu0 %v769
    %822 = vmatprep.subr.mxu0 0.0
    %823 = vmatpush1.msra.mxu0 %v770
    %824 = vmatprep.subr.mxu0 0.0
    %825 = vmatpush1.msra.mxu0 %v771
    %826 = vmatprep.subr.mxu0 0.0
    %827 = vmatpush1.msra.mxu0 %v772
    %828 = vmatprep.subr.mxu0 0.0
    %829 = vmatpush1.msra.mxu0 %v773
    %830 = vmatprep.subr.mxu0 0.0
    %831 = vmatpush1.msra.mxu0 %v774
    %832 = vmatprep.subr.mxu0 0.0
    %833 = vmatpush1.msra.mxu0 %v775
    %834 = vmatprep.subr.mxu0 0.0
    %835 = vmatpush1.msra.mxu0 %v776
    %836 = vmatprep.subr.mxu0 0.0
    %837 = vmatpush1.msra.mxu0 %v777
    %838 = vmatprep.subr.mxu0 0.0
    %839 = vmatpush1.msra.mxu0 %v778
    %840 = vmatprep.subr.mxu0 0.0
    %841 = vmatpush1.msra.mxu0 %v779
    %842 = vmatprep.subr.mxu0 0.0
    %843 = vmatpush1.msra.mxu0 %v780
    %844 = vmatprep.subr.mxu0 0.0
    %845 = vmatpush1.msra.mxu0 %v781
    %846 = vmatprep.subr.mxu0 0.0
    %847 = vmatpush1.msra.mxu0 %v782
    %848 = vmatprep.subr.mxu0 0.0
    %849 = vmatpush1.msra.mxu0 %v783
    %850 = vmatprep.subr.mxu0 0.0
    %851 = vmatpush1.msra.mxu0 %v784
    %852 = vmatprep.subr.mxu0 0.0
    %853 = vmatpush1.msra.mxu0 %v785
    %854 = vmatprep.mubr.f32.mxu0 %v787
    %855 = vmatmul.mubr.f32.gmra.mrb[0].mxu0 %v786
    %v856 = vpop.f32.mrb[0].mxu0
    %v857 = vadd.f32 0.0, %v856
    %v858 = vpop.f32.mrb[0].mxu0
    %859 = vdwg.mxu0
    %v860 = vadd.f32 %v678, %v857
    %v861 = vrot.slane %v209, 3
    %v862 = vrot.slane %v210, 3
    %865 = vmatprep.subr.mxu0 0.0
    %866 = vmatpush1.msra.mxu0 %v754
    %867 = vmatprep.subr.mxu0 0.0
    %868 = vmatpush1.msra.mxu0 %v755
    %869 = vmatprep.subr.mxu0 0.0
    %870 = vmatpush1.msra.mxu0 %v756
    %871 = vmatprep.subr.mxu0 0.0
    %872 = vmatpush1.msra.mxu0 %v757
    %873 = vmatprep.subr.mxu0 0.0
    %874 = vmatpush1.msra.mxu0 %v758
    %875 = vmatprep.subr.mxu0 0.0
    %876 = vmatpush1.msra.mxu0 %v759
    %877 = vmatprep.subr.mxu0 0.0
    %878 = vmatpush1.msra.mxu0 %v760
    %879 = vmatprep.subr.mxu0 0.0
    %880 = vmatpush1.msra.mxu0 %v761
    %881 = vmatprep.subr.mxu0 0.0
    %882 = vmatpush1.msra.mxu0 %v762
    %883 = vmatprep.subr.mxu0 0.0
    %884 = vmatpush1.msra.mxu0 %v763
    %885 = vmatprep.subr.mxu0 0.0
    %886 = vmatpush1.msra.mxu0 %v764
    %887 = vmatprep.subr.mxu0 0.0
    %888 = vmatpush1.msra.mxu0 %v765
    %889 = vmatprep.subr.mxu0 0.0
    %890 = vmatpush1.msra.mxu0 %v766
    %891 = vmatprep.subr.mxu0 0.0
    %892 = vmatpush1.msra.mxu0 %v767
    %893 = vmatprep.subr.mxu0 0.0
    %894 = vmatpush1.msra.mxu0 %v768
    %895 = vmatprep.subr.mxu0 0.0
    %896 = vmatpush1.msra.mxu0 %v769
    %897 = vmatprep.subr.mxu0 0.0
    %898 = vmatpush1.msra.mxu0 %v770
    %899 = vmatprep.subr.mxu0 0.0
    %900 = vmatpush1.msra.mxu0 %v771
    %901 = vmatprep.subr.mxu0 0.0
    %902 = vmatpush1.msra.mxu0 %v772
    %903 = vmatprep.subr.mxu0 0.0
    %904 = vmatpush1.msra.mxu0 %v773
    %905 = vmatprep.subr.mxu0 0.0
    %906 = vmatpush1.msra.mxu0 %v774
    %907 = vmatprep.subr.mxu0 0.0
    %908 = vmatpush1.msra.mxu0 %v775
    %909 = vmatprep.subr.mxu0 0.0
    %910 = vmatpush1.msra.mxu0 %v776
    %911 = vmatprep.subr.mxu0 0.0
    %912 = vmatpush1.msra.mxu0 %v777
    %913 = vmatprep.subr.mxu0 0.0
    %914 = vmatpush1.msra.mxu0 %v778
    %915 = vmatprep.subr.mxu0 0.0
    %916 = vmatpush1.msra.mxu0 %v779
    %917 = vmatprep.subr.mxu0 0.0
    %918 = vmatpush1.msra.mxu0 %v780
    %919 = vmatprep.subr.mxu0 0.0
    %920 = vmatpush1.msra.mxu0 %v781
    %921 = vmatprep.subr.mxu0 0.0
    %922 = vmatpush1.msra.mxu0 %v782
    %923 = vmatprep.subr.mxu0 0.0
    %924 = vmatpush1.msra.mxu0 %v783
    %925 = vmatprep.subr.mxu0 0.0
    %926 = vmatpush1.msra.mxu0 %v784
    %927 = vmatprep.subr.mxu0 0.0
    %928 = vmatpush1.msra.mxu0 %v785
    %929 = vmatprep.mubr.f32.mxu0 %v862
    %930 = vmatmul.mubr.f32.gmra.mrb[0].mxu0 %v861
    %v931 = vpop.f32.mrb[0].mxu0
    %v932 = vadd.f32 0.0, %v931
    %v933 = vpop.f32.mrb[0].mxu0
    %934 = vdwg.mxu0
    %v935 = vadd.f32 %v753, %v932
    %v936 = vld [vmem:[%s3 + $0x400] sm:$0xff]
    %v937 = vld [vmem:[%s3 + $0x408] sm:$0xff]
    %v938 = vld [vmem:[%s3 + $0x410] sm:$0xff]
    %v939 = vld [vmem:[%s3 + $0x418] sm:$0xff]
    %v940 = vld [vmem:[%s3 + $0x420] sm:$0xff]
    %v941 = vld [vmem:[%s3 + $0x428] sm:$0xff]
    %v942 = vld [vmem:[%s3 + $0x430] sm:$0xff]
    %v943 = vld [vmem:[%s3 + $0x438] sm:$0xff]
    %v944 = vld [vmem:[%s3 + $0x440] sm:$0xff]
    %v945 = vld [vmem:[%s3 + $0x448] sm:$0xff]
    %v946 = vld [vmem:[%s3 + $0x450] sm:$0xff]
    %v947 = vld [vmem:[%s3 + $0x458] sm:$0xff]
    %v948 = vld [vmem:[%s3 + $0x460] sm:$0xff]
    %v949 = vld [vmem:[%s3 + $0x468] sm:$0xff]
    %v950 = vld [vmem:[%s3 + $0x470] sm:$0xff]
    %v951 = vld [vmem:[%s3 + $0x478] sm:$0xff]
    %v952 = vld [vmem:[%s3 + $0x480] sm:$0xff]
    %v953 = vld [vmem:[%s3 + $0x488] sm:$0xff]
    %v954 = vld [vmem:[%s3 + $0x490] sm:$0xff]
    %v955 = vld [vmem:[%s3 + $0x498] sm:$0xff]
    %v956 = vld [vmem:[%s3 + $0x4a0] sm:$0xff]
    %v957 = vld [vmem:[%s3 + $0x4a8] sm:$0xff]
    %v958 = vld [vmem:[%s3 + $0x4b0] sm:$0xff]
    %v959 = vld [vmem:[%s3 + $0x4b8] sm:$0xff]
    %v960 = vld [vmem:[%s3 + $0x4c0] sm:$0xff]
    %v961 = vld [vmem:[%s3 + $0x4c8] sm:$0xff]
    %v962 = vld [vmem:[%s3 + $0x4d0] sm:$0xff]
    %v963 = vld [vmem:[%s3 + $0x4d8] sm:$0xff]
    %v964 = vld [vmem:[%s3 + $0x4e0] sm:$0xff]
    %v965 = vld [vmem:[%s3 + $0x4e8] sm:$0xff]
    %v966 = vld [vmem:[%s3 + $0x4f0] sm:$0xff]
    %v967 = vld [vmem:[%s3 + $0x4f8] sm:$0xff]
    %v968 = vrot.slane %v207, 4
    %v969 = vrot.slane %v208, 4
    %972 = vmatprep.subr.mxu0 0.0
    %973 = vmatpush1.msra.mxu0 %v936
    %974 = vmatprep.subr.mxu0 0.0
    %975 = vmatpush1.msra.mxu0 %v937
    %976 = vmatprep.subr.mxu0 0.0
    %977 = vmatpush1.msra.mxu0 %v938
    %978 = vmatprep.subr.mxu0 0.0
    %979 = vmatpush1.msra.mxu0 %v939
    %980 = vmatprep.subr.mxu0 0.0
    %981 = vmatpush1.msra.mxu0 %v940
    %982 = vmatprep.subr.mxu0 0.0
    %983 = vmatpush1.msra.mxu0 %v941
    %984 = vmatprep.subr.mxu0 0.0
    %985 = vmatpush1.msra.mxu0 %v942
    %986 = vmatprep.subr.mxu0 0.0
    %987 = vmatpush1.msra.mxu0 %v943
    %988 = vmatprep.subr.mxu0 0.0
    %989 = vmatpush1.msra.mxu0 %v944
    %990 = vmatprep.subr.mxu0 0.0
    %991 = vmatpush1.msra.mxu0 %v945
    %992 = vmatprep.subr.mxu0 0.0
    %993 = vmatpush1.msra.mxu0 %v946
    %994 = vmatprep.subr.mxu0 0.0
    %995 = vmatpush1.msra.mxu0 %v947
    %996 = vmatprep.subr.mxu0 0.0
    %997 = vmatpush1.msra.mxu0 %v948
    %998 = vmatprep.subr.mxu0 0.0
    %999 = vmatpush1.msra.mxu0 %v949
    %1000 = vmatprep.subr.mxu0 0.0
    %1001 = vmatpush1.msra.mxu0 %v950
    %1002 = vmatprep.subr.mxu0 0.0
    %1003 = vmatpush1.msra.mxu0 %v951
    %1004 = vmatprep.subr.mxu0 0.0
    %1005 = vmatpush1.msra.mxu0 %v952
    %1006 = vmatprep.subr.mxu0 0.0
    %1007 = vmatpush1.msra.mxu0 %v953
    %1008 = vmatprep.subr.mxu0 0.0
    %1009 = vmatpush1.msra.mxu0 %v954
    %1010 = vmatprep.subr.mxu0 0.0
    %1011 = vmatpush1.msra.mxu0 %v955
    %1012 = vmatprep.subr.mxu0 0.0
    %1013 = vmatpush1.msra.mxu0 %v956
    %1014 = vmatprep.subr.mxu0 0.0
    %1015 = vmatpush1.msra.mxu0 %v957
    %1016 = vmatprep.subr.mxu0 0.0
    %1017 = vmatpush1.msra.mxu0 %v958
    %1018 = vmatprep.subr.mxu0 0.0
    %1019 = vmatpush1.msra.mxu0 %v959
    %1020 = vmatprep.subr.mxu0 0.0
    %1021 = vmatpush1.msra.mxu0 %v960
    %1022 = vmatprep.subr.mxu0 0.0
    %1023 = vmatpush1.msra.mxu0 %v961
    %1024 = vmatprep.subr.mxu0 0.0
    %1025 = vmatpush1.msra.mxu0 %v962
    %1026 = vmatprep.subr.mxu0 0.0
    %1027 = vmatpush1.msra.mxu0 %v963
    %1028 = vmatprep.subr.mxu0 0.0
    %1029 = vmatpush1.msra.mxu0 %v964
    %1030 = vmatprep.subr.mxu0 0.0
    %1031 = vmatpush1.msra.mxu0 %v965
    %1032 = vmatprep.subr.mxu0 0.0
    %1033 = vmatpush1.msra.mxu0 %v966
    %1034 = vmatprep.subr.mxu0 0.0
    %1035 = vmatpush1.msra.mxu0 %v967
    %1036 = vmatprep.mubr.f32.mxu0 %v969
    %1037 = vmatmul.mubr.f32.gmra.mrb[0].mxu0 %v968
    %v1038 = vpop.f32.mrb[0].mxu0
    %v1039 = vadd.f32 0.0, %v1038
    %v1040 = vpop.f32.mrb[0].mxu0
    %1041 = vdwg.mxu0
    %v1042 = vadd.f32 %v860, %v1039
    %v1043 = vrot.slane %v209, 4
    %v1044 = vrot.slane %v210, 4
    %1047 = vmatprep.subr.mxu0 0.0
    %1048 = vmatpush1.msra.mxu0 %v936
    %1049 = vmatprep.subr.mxu0 0.0
    %1050 = vmatpush1.msra.mxu0 %v937
    %1051 = vmatprep.subr.mxu0 0.0
    %1052 = vmatpush1.msra.mxu0 %v938
    %1053 = vmatprep.subr.mxu0 0.0
    %1054 = vmatpush1.msra.mxu0 %v939
    %1055 = vmatprep.subr.mxu0 0.0
    %1056 = vmatpush1.msra.mxu0 %v940
    %1057 = vmatprep.subr.mxu0 0.0
    %1058 = vmatpush1.msra.mxu0 %v941
    %1059 = vmatprep.subr.mxu0 0.0
    %1060 = vmatpush1.msra.mxu0 %v942
    %1061 = vmatprep.subr.mxu0 0.0
    %1062 = vmatpush1.msra.mxu0 %v943
    %1063 = vmatprep.subr.mxu0 0.0
    %1064 = vmatpush1.msra.mxu0 %v944
    %1065 = vmatprep.subr.mxu0 0.0
    %1066 = vmatpush1.msra.mxu0 %v945
    %1067 = vmatprep.subr.mxu0 0.0
    %1068 = vmatpush1.msra.mxu0 %v946
    %1069 = vmatprep.subr.mxu0 0.0
    %1070 = vmatpush1.msra.mxu0 %v947
    %1071 = vmatprep.subr.mxu0 0.0
    %1072 = vmatpush1.msra.mxu0 %v948
    %1073 = vmatprep.subr.mxu0 0.0
    %1074 = vmatpush1.msra.mxu0 %v949
    %1075 = vmatprep.subr.mxu0 0.0
    %1076 = vmatpush1.msra.mxu0 %v950
    %1077 = vmatprep.subr.mxu0 0.0
    %1078 = vmatpush1.msra.mxu0 %v951
    %1079 = vmatprep.subr.mxu0 0.0
    %1080 = vmatpush1.msra.mxu0 %v952
    %1081 = vmatprep.subr.mxu0 0.0
    %1082 = vmatpush1.msra.mxu0 %v953
    %1083 = vmatprep.subr.mxu0 0.0
    %1084 = vmatpush1.msra.mxu0 %v954
    %1085 = vmatprep.subr.mxu0 0.0
    %1086 = vmatpush1.msra.mxu0 %v955
    %1087 = vmatprep.subr.mxu0 0.0
    %1088 = vmatpush1.msra.mxu0 %v956
    %1089 = vmatprep.subr.mxu0 0.0
    %1090 = vmatpush1.msra.mxu0 %v957
    %1091 = vmatprep.subr.mxu0 0.0
    %1092 = vmatpush1.msra.mxu0 %v958
    %1093 = vmatprep.subr.mxu0 0.0
    %1094 = vmatpush1.msra.mxu0 %v959
    %1095 = vmatprep.subr.mxu0 0.0
    %1096 = vmatpush1.msra.mxu0 %v960
    %1097 = vmatprep.subr.mxu0 0.0
    %1098 = vmatpush1.msra.mxu0 %v961
    %1099 = vmatprep.subr.mxu0 0.0
    %1100 = vmatpush1.msra.mxu0 %v962
    %1101 = vmatprep.subr.mxu0 0.0
    %1102 = vmatpush1.msra.mxu0 %v963
    %1103 = vmatprep.subr.mxu0 0.0
    %1104 = vmatpush1.msra.mxu0 %v964
    %1105 = vmatprep.subr.mxu0 0.0
    %1106 = vmatpush1.msra.mxu0 %v965
    %1107 = vmatprep.subr.mxu0 0.0
    %1108 = vmatpush1.msra.mxu0 %v966
    %1109 = vmatprep.subr.mxu0 0.0
    %1110 = vmatpush1.msra.mxu0 %v967
    %1111 = vmatprep.mubr.f32.mxu0 %v1044
    %1112 = vmatmul.mubr.f32.gmra.mrb[0].mxu0 %v1043
    %v1113 = vpop.f32.mrb[0].mxu0
    %v1114 = vadd.f32 0.0, %v1113
    %v1115 = vpop.f32.mrb[0].mxu0
    %1116 = vdwg.mxu0
    %v1117 = vadd.f32 %v935, %v1114
    %v1118 = vld [vmem:[%s3 + $0x500] sm:$0xff]
    %v1119 = vld [vmem:[%s3 + $0x508] sm:$0xff]
    %v1120 = vld [vmem:[%s3 + $0x510] sm:$0xff]
    %v1121 = vld [vmem:[%s3 + $0x518] sm:$0xff]
    %v1122 = vld [vmem:[%s3 + $0x520] sm:$0xff]
    %v1123 = vld [vmem:[%s3 + $0x528] sm:$0xff]
    %v1124 = vld [vmem:[%s3 + $0x530] sm:$0xff]
    %v1125 = vld [vmem:[%s3 + $0x538] sm:$0xff]
    %v1126 = vld [vmem:[%s3 + $0x540] sm:$0xff]
    %v1127 = vld [vmem:[%s3 + $0x548] sm:$0xff]
    %v1128 = vld [vmem:[%s3 + $0x550] sm:$0xff]
    %v1129 = vld [vmem:[%s3 + $0x558] sm:$0xff]
    %v1130 = vld [vmem:[%s3 + $0x560] sm:$0xff]
    %v1131 = vld [vmem:[%s3 + $0x568] sm:$0xff]
    %v1132 = vld [vmem:[%s3 + $0x570] sm:$0xff]
    %v1133 = vld [vmem:[%s3 + $0x578] sm:$0xff]
    %v1134 = vld [vmem:[%s3 + $0x580] sm:$0xff]
    %v1135 = vld [vmem:[%s3 + $0x588] sm:$0xff]
    %v1136 = vld [vmem:[%s3 + $0x590] sm:$0xff]
    %v1137 = vld [vmem:[%s3 + $0x598] sm:$0xff]
    %v1138 = vld [vmem:[%s3 + $0x5a0] sm:$0xff]
    %v1139 = vld [vmem:[%s3 + $0x5a8] sm:$0xff]
    %v1140 = vld [vmem:[%s3 + $0x5b0] sm:$0xff]
    %v1141 = vld [vmem:[%s3 + $0x5b8] sm:$0xff]
    %v1142 = vld [vmem:[%s3 + $0x5c0] sm:$0xff]
    %v1143 = vld [vmem:[%s3 + $0x5c8] sm:$0xff]
    %v1144 = vld [vmem:[%s3 + $0x5d0] sm:$0xff]
    %v1145 = vld [vmem:[%s3 + $0x5d8] sm:$0xff]
    %v1146 = vld [vmem:[%s3 + $0x5e0] sm:$0xff]
    %v1147 = vld [vmem:[%s3 + $0x5e8] sm:$0xff]
    %v1148 = vld [vmem:[%s3 + $0x5f0] sm:$0xff]
    %v1149 = vld [vmem:[%s3 + $0x5f8] sm:$0xff]
    %v1150 = vrot.slane %v207, 5
    %v1151 = vrot.slane %v208, 5
    %1154 = vmatprep.subr.mxu0 0.0
    %1155 = vmatpush1.msra.mxu0 %v1118
    %1156 = vmatprep.subr.mxu0 0.0
    %1157 = vmatpush1.msra.mxu0 %v1119
    %1158 = vmatprep.subr.mxu0 0.0
    %1159 = vmatpush1.msra.mxu0 %v1120
    %1160 = vmatprep.subr.mxu0 0.0
    %1161 = vmatpush1.msra.mxu0 %v1121
    %1162 = vmatprep.subr.mxu0 0.0
    %1163 = vmatpush1.msra.mxu0 %v1122
    %1164 = vmatprep.subr.mxu0 0.0
    %1165 = vmatpush1.msra.mxu0 %v1123
    %1166 = vmatprep.subr.mxu0 0.0
    %1167 = vmatpush1.msra.mxu0 %v1124
    %1168 = vmatprep.subr.mxu0 0.0
    %1169 = vmatpush1.msra.mxu0 %v1125
    %1170 = vmatprep.subr.mxu0 0.0
    %1171 = vmatpush1.msra.mxu0 %v1126
    %1172 = vmatprep.subr.mxu0 0.0
    %1173 = vmatpush1.msra.mxu0 %v1127
    %1174 = vmatprep.subr.mxu0 0.0
    %1175 = vmatpush1.msra.mxu0 %v1128
    %1176 = vmatprep.subr.mxu0 0.0
    %1177 = vmatpush1.msra.mxu0 %v1129
    %1178 = vmatprep.subr.mxu0 0.0
    %1179 = vmatpush1.msra.mxu0 %v1130
    %1180 = vmatprep.subr.mxu0 0.0
    %1181 = vmatpush1.msra.mxu0 %v1131
    %1182 = vmatprep.subr.mxu0 0.0
    %1183 = vmatpush1.msra.mxu0 %v1132
    %1184 = vmatprep.subr.mxu0 0.0
    %1185 = vmatpush1.msra.mxu0 %v1133
    %1186 = vmatprep.subr.mxu0 0.0
    %1187 = vmatpush1.msra.mxu0 %v1134
    %1188 = vmatprep.subr.mxu0 0.0
    %1189 = vmatpush1.msra.mxu0 %v1135
    %1190 = vmatprep.subr.mxu0 0.0
    %1191 = vmatpush1.msra.mxu0 %v1136
    %1192 = vmatprep.subr.mxu0 0.0
    %1193 = vmatpush1.msra.mxu0 %v1137
    %1194 = vmatprep.subr.mxu0 0.0
    %1195 = vmatpush1.msra.mxu0 %v1138
    %1196 = vmatprep.subr.mxu0 0.0
    %1197 = vmatpush1.msra.mxu0 %v1139
    %1198 = vmatprep.subr.mxu0 0.0
    %1199 = vmatpush1.msra.mxu0 %v1140
    %1200 = vmatprep.subr.mxu0 0.0
    %1201 = vmatpush1.msra.mxu0 %v1141
    %1202 = vmatprep.subr.mxu0 0.0
    %1203 = vmatpush1.msra.mxu0 %v1142
    %1204 = vmatprep.subr.mxu0 0.0
    %1205 = vmatpush1.msra.mxu0 %v1143
    %1206 = vmatprep.subr.mxu0 0.0
    %1207 = vmatpush1.msra.mxu0 %v1144
    %1208 = vmatprep.subr.mxu0 0.0
    %1209 = vmatpush1.msra.mxu0 %v1145
    %1210 = vmatprep.subr.mxu0 0.0
    %1211 = vmatpush1.msra.mxu0 %v1146
    %1212 = vmatprep.subr.mxu0 0.0
    %1213 = vmatpush1.msra.mxu0 %v1147
    %1214 = vmatprep.subr.mxu0 0.0
    %1215 = vmatpush1.msra.mxu0 %v1148
    %1216 = vmatprep.subr.mxu0 0.0
    %1217 = vmatpush1.msra.mxu0 %v1149
    %1218 = vmatprep.mubr.f32.mxu0 %v1151
    %1219 = vmatmul.mubr.f32.gmra.mrb[0].mxu0 %v1150
    %v1220 = vpop.f32.mrb[0].mxu0
    %v1221 = vadd.f32 0.0, %v1220
    %v1222 = vpop.f32.mrb[0].mxu0
    %1223 = vdwg.mxu0
    %v1224 = vadd.f32 %v1042, %v1221
    %v1225 = vrot.slane %v209, 5
    %v1226 = vrot.slane %v210, 5
    %1229 = vmatprep.subr.mxu0 0.0
    %1230 = vmatpush1.msra.mxu0 %v1118
    %1231 = vmatprep.subr.mxu0 0.0
    %1232 = vmatpush1.msra.mxu0 %v1119
    %1233 = vmatprep.subr.mxu0 0.0
    %1234 = vmatpush1.msra.mxu0 %v1120
    %1235 = vmatprep.subr.mxu0 0.0
    %1236 = vmatpush1.msra.mxu0 %v1121
    %1237 = vmatprep.subr.mxu0 0.0
    %1238 = vmatpush1.msra.mxu0 %v1122
    %1239 = vmatprep.subr.mxu0 0.0
    %1240 = vmatpush1.msra.mxu0 %v1123
    %1241 = vmatprep.subr.mxu0 0.0
    %1242 = vmatpush1.msra.mxu0 %v1124
    %1243 = vmatprep.subr.mxu0 0.0
    %1244 = vmatpush1.msra.mxu0 %v1125
    %1245 = vmatprep.subr.mxu0 0.0
    %1246 = vmatpush1.msra.mxu0 %v1126
    %1247 = vmatprep.subr.mxu0 0.0
    %1248 = vmatpush1.msra.mxu0 %v1127
    %1249 = vmatprep.subr.mxu0 0.0
    %1250 = vmatpush1.msra.mxu0 %v1128
    %1251 = vmatprep.subr.mxu0 0.0
    %1252 = vmatpush1.msra.mxu0 %v1129
    %1253 = vmatprep.subr.mxu0 0.0
    %1254 = vmatpush1.msra.mxu0 %v1130
    %1255 = vmatprep.subr.mxu0 0.0
    %1256 = vmatpush1.msra.mxu0 %v1131
    %1257 = vmatprep.subr.mxu0 0.0
    %1258 = vmatpush1.msra.mxu0 %v1132
    %1259 = vmatprep.subr.mxu0 0.0
    %1260 = vmatpush1.msra.mxu0 %v1133
    %1261 = vmatprep.subr.mxu0 0.0
    %1262 = vmatpush1.msra.mxu0 %v1134
    %1263 = vmatprep.subr.mxu0 0.0
    %1264 = vmatpush1.msra.mxu0 %v1135
    %1265 = vmatprep.subr.mxu0 0.0
    %1266 = vmatpush1.msra.mxu0 %v1136
    %1267 = vmatprep.subr.mxu0 0.0
    %1268 = vmatpush1.msra.mxu0 %v1137
    %1269 = vmatprep.subr.mxu0 0.0
    %1270 = vmatpush1.msra.mxu0 %v1138
    %1271 = vmatprep.subr.mxu0 0.0
    %1272 = vmatpush1.msra.mxu0 %v1139
    %1273 = vmatprep.subr.mxu0 0.0
    %1274 = vmatpush1.msra.mxu0 %v1140
    %1275 = vmatprep.subr.mxu0 0.0
    %1276 = vmatpush1.msra.mxu0 %v1141
    %1277 = vmatprep.subr.mxu0 0.0
    %1278 = vmatpush1.msra.mxu0 %v1142
    %1279 = vmatprep.subr.mxu0 0.0
    %1280 = vmatpush1.msra.mxu0 %v1143
    %1281 = vmatprep.subr.mxu0 0.0
    %1282 = vmatpush1.msra.mxu0 %v1144
    %1283 = vmatprep.subr.mxu0 0.0
    %1284 = vmatpush1.msra.mxu0 %v1145
    %1285 = vmatprep.subr.mxu0 0.0
    %1286 = vmatpush1.msra.mxu0 %v1146
    %1287 = vmatprep.subr.mxu0 0.0
    %1288 = vmatpush1.msra.mxu0 %v1147
    %1289 = vmatprep.subr.mxu0 0.0
    %1290 = vmatpush1.msra.mxu0 %v1148
    %1291 = vmatprep.subr.mxu0 0.0
    %1292 = vmatpush1.msra.mxu0 %v1149
    %1293 = vmatprep.mubr.f32.mxu0 %v1226
    %1294 = vmatmul.mubr.f32.gmra.mrb[0].mxu0 %v1225
    %v1295 = vpop.f32.mrb[0].mxu0
    %v1296 = vadd.f32 0.0, %v1295
    %v1297 = vpop.f32.mrb[0].mxu0
    %1298 = vdwg.mxu0
    %v1299 = vadd.f32 %v1117, %v1296
    %v1300 = vld [vmem:[%s3 + $0x600] sm:$0xff]
    %v1301 = vld [vmem:[%s3 + $0x608] sm:$0xff]
    %v1302 = vld [vmem:[%s3 + $0x610] sm:$0xff]
    %v1303 = vld [vmem:[%s3 + $0x618] sm:$0xff]
    %v1304 = vld [vmem:[%s3 + $0x620] sm:$0xff]
    %v1305 = vld [vmem:[%s3 + $0x628] sm:$0xff]
    %v1306 = vld [vmem:[%s3 + $0x630] sm:$0xff]
    %v1307 = vld [vmem:[%s3 + $0x638] sm:$0xff]
    %v1308 = vld [vmem:[%s3 + $0x640] sm:$0xff]
    %v1309 = vld [vmem:[%s3 + $0x648] sm:$0xff]
    %v1310 = vld [vmem:[%s3 + $0x650] sm:$0xff]
    %v1311 = vld [vmem:[%s3 + $0x658] sm:$0xff]
    %v1312 = vld [vmem:[%s3 + $0x660] sm:$0xff]
    %v1313 = vld [vmem:[%s3 + $0x668] sm:$0xff]
    %v1314 = vld [vmem:[%s3 + $0x670] sm:$0xff]
    %v1315 = vld [vmem:[%s3 + $0x678] sm:$0xff]
    %v1316 = vld [vmem:[%s3 + $0x680] sm:$0xff]
    %v1317 = vld [vmem:[%s3 + $0x688] sm:$0xff]
    %v1318 = vld [vmem:[%s3 + $0x690] sm:$0xff]
    %v1319 = vld [vmem:[%s3 + $0x698] sm:$0xff]
    %v1320 = vld [vmem:[%s3 + $0x6a0] sm:$0xff]
    %v1321 = vld [vmem:[%s3 + $0x6a8] sm:$0xff]
    %v1322 = vld [vmem:[%s3 + $0x6b0] sm:$0xff]
    %v1323 = vld [vmem:[%s3 + $0x6b8] sm:$0xff]
    %v1324 = vld [vmem:[%s3 + $0x6c0] sm:$0xff]
    %v1325 = vld [vmem:[%s3 + $0x6c8] sm:$0xff]
    %v1326 = vld [vmem:[%s3 + $0x6d0] sm:$0xff]
    %v1327 = vld [vmem:[%s3 + $0x6d8] sm:$0xff]
    %v1328 = vld [vmem:[%s3 + $0x6e0] sm:$0xff]
    %v1329 = vld [vmem:[%s3 + $0x6e8] sm:$0xff]
    %v1330 = vld [vmem:[%s3 + $0x6f0] sm:$0xff]
    %v1331 = vld [vmem:[%s3 + $0x6f8] sm:$0xff]
    %v1332 = vrot.slane %v207, 6
    %v1333 = vrot.slane %v208, 6
    %1336 = vmatprep.subr.mxu0 0.0
    %1337 = vmatpush1.msra.mxu0 %v1300
    %1338 = vmatprep.subr.mxu0 0.0
    %1339 = vmatpush1.msra.mxu0 %v1301
    %1340 = vmatprep.subr.mxu0 0.0
    %1341 = vmatpush1.msra.mxu0 %v1302
    %1342 = vmatprep.subr.mxu0 0.0
    %1343 = vmatpush1.msra.mxu0 %v1303
    %1344 = vmatprep.subr.mxu0 0.0
    %1345 = vmatpush1.msra.mxu0 %v1304
    %1346 = vmatprep.subr.mxu0 0.0
    %1347 = vmatpush1.msra.mxu0 %v1305
    %1348 = vmatprep.subr.mxu0 0.0
    %1349 = vmatpush1.msra.mxu0 %v1306
    %1350 = vmatprep.subr.mxu0 0.0
    %1351 = vmatpush1.msra.mxu0 %v1307
    %1352 = vmatprep.subr.mxu0 0.0
    %1353 = vmatpush1.msra.mxu0 %v1308
    %1354 = vmatprep.subr.mxu0 0.0
    %1355 = vmatpush1.msra.mxu0 %v1309
    %1356 = vmatprep.subr.mxu0 0.0
    %1357 = vmatpush1.msra.mxu0 %v1310
    %1358 = vmatprep.subr.mxu0 0.0
    %1359 = vmatpush1.msra.mxu0 %v1311
    %1360 = vmatprep.subr.mxu0 0.0
    %1361 = vmatpush1.msra.mxu0 %v1312
    %1362 = vmatprep.subr.mxu0 0.0
    %1363 = vmatpush1.msra.mxu0 %v1313
    %1364 = vmatprep.subr.mxu0 0.0
    %1365 = vmatpush1.msra.mxu0 %v1314
    %1366 = vmatprep.subr.mxu0 0.0
    %1367 = vmatpush1.msra.mxu0 %v1315
    %1368 = vmatprep.subr.mxu0 0.0
    %1369 = vmatpush1.msra.mxu0 %v1316
    %1370 = vmatprep.subr.mxu0 0.0
    %1371 = vmatpush1.msra.mxu0 %v1317
    %1372 = vmatprep.subr.mxu0 0.0
    %1373 = vmatpush1.msra.mxu0 %v1318
    %1374 = vmatprep.subr.mxu0 0.0
    %1375 = vmatpush1.msra.mxu0 %v1319
    %1376 = vmatprep.subr.mxu0 0.0
    %1377 = vmatpush1.msra.mxu0 %v1320
    %1378 = vmatprep.subr.mxu0 0.0
    %1379 = vmatpush1.msra.mxu0 %v1321
    %1380 = vmatprep.subr.mxu0 0.0
    %1381 = vmatpush1.msra.mxu0 %v1322
    %1382 = vmatprep.subr.mxu0 0.0
    %1383 = vmatpush1.msra.mxu0 %v1323
    %1384 = vmatprep.subr.mxu0 0.0
    %1385 = vmatpush1.msra.mxu0 %v1324
    %1386 = vmatprep.subr.mxu0 0.0
    %1387 = vmatpush1.msra.mxu0 %v1325
    %1388 = vmatprep.subr.mxu0 0.0
    %1389 = vmatpush1.msra.mxu0 %v1326
    %1390 = vmatprep.subr.mxu0 0.0
    %1391 = vmatpush1.msra.mxu0 %v1327
    %1392 = vmatprep.subr.mxu0 0.0
    %1393 = vmatpush1.msra.mxu0 %v1328
    %1394 = vmatprep.subr.mxu0 0.0
    %1395 = vmatpush1.msra.mxu0 %v1329
    %1396 = vmatprep.subr.mxu0 0.0
    %1397 = vmatpush1.msra.mxu0 %v1330
    %1398 = vmatprep.subr.mxu0 0.0
    %1399 = vmatpush1.msra.mxu0 %v1331
    %1400 = vmatprep.mubr.f32.mxu0 %v1333
    %1401 = vmatmul.mubr.f32.gmra.mrb[0].mxu0 %v1332
    %v1402 = vpop.f32.mrb[0].mxu0
    %v1403 = vadd.f32 0.0, %v1402
    %v1404 = vpop.f32.mrb[0].mxu0
    %1405 = vdwg.mxu0
    %v1406 = vadd.f32 %v1224, %v1403
    %v1407 = vrot.slane %v209, 6
    %v1408 = vrot.slane %v210, 6
    %1411 = vmatprep.subr.mxu0 0.0
    %1412 = vmatpush1.msra.mxu0 %v1300
    %1413 = vmatprep.subr.mxu0 0.0
    %1414 = vmatpush1.msra.mxu0 %v1301
    %1415 = vmatprep.subr.mxu0 0.0
    %1416 = vmatpush1.msra.mxu0 %v1302
    %1417 = vmatprep.subr.mxu0 0.0
    %1418 = vmatpush1.msra.mxu0 %v1303
    %1419 = vmatprep.subr.mxu0 0.0
    %1420 = vmatpush1.msra.mxu0 %v1304
    %1421 = vmatprep.subr.mxu0 0.0
    %1422 = vmatpush1.msra.mxu0 %v1305
    %1423 = vmatprep.subr.mxu0 0.0
    %1424 = vmatpush1.msra.mxu0 %v1306
    %1425 = vmatprep.subr.mxu0 0.0
    %1426 = vmatpush1.msra.mxu0 %v1307
    %1427 = vmatprep.subr.mxu0 0.0
    %1428 = vmatpush1.msra.mxu0 %v1308
    %1429 = vmatprep.subr.mxu0 0.0
    %1430 = vmatpush1.msra.mxu0 %v1309
    %1431 = vmatprep.subr.mxu0 0.0
    %1432 = vmatpush1.msra.mxu0 %v1310
    %1433 = vmatprep.subr.mxu0 0.0
    %1434 = vmatpush1.msra.mxu0 %v1311
    %1435 = vmatprep.subr.mxu0 0.0
    %1436 = vmatpush1.msra.mxu0 %v1312
    %1437 = vmatprep.subr.mxu0 0.0
    %1438 = vmatpush1.msra.mxu0 %v1313
    %1439 = vmatprep.subr.mxu0 0.0
    %1440 = vmatpush1.msra.mxu0 %v1314
    %1441 = vmatprep.subr.mxu0 0.0
    %1442 = vmatpush1.msra.mxu0 %v1315
    %1443 = vmatprep.subr.mxu0 0.0
    %1444 = vmatpush1.msra.mxu0 %v1316
    %1445 = vmatprep.subr.mxu0 0.0
    %1446 = vmatpush1.msra.mxu0 %v1317
    %1447 = vmatprep.subr.mxu0 0.0
    %1448 = vmatpush1.msra.mxu0 %v1318
    %1449 = vmatprep.subr.mxu0 0.0
    %1450 = vmatpush1.msra.mxu0 %v1319
    %1451 = vmatprep.subr.mxu0 0.0
    %1452 = vmatpush1.msra.mxu0 %v1320
    %1453 = vmatprep.subr.mxu0 0.0
    %1454 = vmatpush1.msra.mxu0 %v1321
    %1455 = vmatprep.subr.mxu0 0.0
    %1456 = vmatpush1.msra.mxu0 %v1322
    %1457 = vmatprep.subr.mxu0 0.0
    %1458 = vmatpush1.msra.mxu0 %v1323
    %1459 = vmatprep.subr.mxu0 0.0
    %1460 = vmatpush1.msra.mxu0 %v1324
    %1461 = vmatprep.subr.mxu0 0.0
    %1462 = vmatpush1.msra.mxu0 %v1325
    %1463 = vmatprep.subr.mxu0 0.0
    %1464 = vmatpush1.msra.mxu0 %v1326
    %1465 = vmatprep.subr.mxu0 0.0
    %1466 = vmatpush1.msra.mxu0 %v1327
    %1467 = vmatprep.subr.mxu0 0.0
    %1468 = vmatpush1.msra.mxu0 %v1328
    %1469 = vmatprep.subr.mxu0 0.0
    %1470 = vmatpush1.msra.mxu0 %v1329
    %1471 = vmatprep.subr.mxu0 0.0
    %1472 = vmatpush1.msra.mxu0 %v1330
    %1473 = vmatprep.subr.mxu0 0.0
    %1474 = vmatpush1.msra.mxu0 %v1331
    %1475 = vmatprep.mubr.f32.mxu0 %v1408
    %1476 = vmatmul.mubr.f32.gmra.mrb[0].mxu0 %v1407
    %v1477 = vpop.f32.mrb[0].mxu0
    %v1478 = vadd.f32 0.0, %v1477
    %v1479 = vpop.f32.mrb[0].mxu0
    %1480 = vdwg.mxu0
    %v1481 = vadd.f32 %v1299, %v1478
    %v1482 = vld [vmem:[%s3 + $0x700] sm:$0xff]
    %v1483 = vld [vmem:[%s3 + $0x708] sm:$0xff]
    %v1484 = vld [vmem:[%s3 + $0x710] sm:$0xff]
    %v1485 = vld [vmem:[%s3 + $0x718] sm:$0xff]
    %v1486 = vld [vmem:[%s3 + $0x720] sm:$0xff]
    %v1487 = vld [vmem:[%s3 + $0x728] sm:$0xff]
    %v1488 = vld [vmem:[%s3 + $0x730] sm:$0xff]
    %v1489 = vld [vmem:[%s3 + $0x738] sm:$0xff]
    %v1490 = vld [vmem:[%s3 + $0x740] sm:$0xff]
    %v1491 = vld [vmem:[%s3 + $0x748] sm:$0xff]
    %v1492 = vld [vmem:[%s3 + $0x750] sm:$0xff]
    %v1493 = vld [vmem:[%s3 + $0x758] sm:$0xff]
    %v1494 = vld [vmem:[%s3 + $0x760] sm:$0xff]
    %v1495 = vld [vmem:[%s3 + $0x768] sm:$0xff]
    %v1496 = vld [vmem:[%s3 + $0x770] sm:$0xff]
    %v1497 = vld [vmem:[%s3 + $0x778] sm:$0xff]
    %v1498 = vld [vmem:[%s3 + $0x780] sm:$0xff]
    %v1499 = vld [vmem:[%s3 + $0x788] sm:$0xff]
    %v1500 = vld [vmem:[%s3 + $0x790] sm:$0xff]
    %v1501 = vld [vmem:[%s3 + $0x798] sm:$0xff]
    %v1502 = vld [vmem:[%s3 + $0x7a0] sm:$0xff]
    %v1503 = vld [vmem:[%s3 + $0x7a8] sm:$0xff]
    %v1504 = vld [vmem:[%s3 + $0x7b0] sm:$0xff]
    %v1505 = vld [vmem:[%s3 + $0x7b8] sm:$0xff]
    %v1506 = vld [vmem:[%s3 + $0x7c0] sm:$0xff]
    %v1507 = vld [vmem:[%s3 + $0x7c8] sm:$0xff]
    %v1508 = vld [vmem:[%s3 + $0x7d0] sm:$0xff]
    %v1509 = vld [vmem:[%s3 + $0x7d8] sm:$0xff]
    %v1510 = vld [vmem:[%s3 + $0x7e0] sm:$0xff]
    %v1511 = vld [vmem:[%s3 + $0x7e8] sm:$0xff]
    %v1512 = vld [vmem:[%s3 + $0x7f0] sm:$0xff]
    %v1513 = vld [vmem:[%s3 + $0x7f8] sm:$0xff]
    %v1514 = vrot.slane %v207, 7
    %v1515 = vrot.slane %v208, 7
    %1518 = vmatprep.subr.mxu0 0.0
    %1519 = vmatpush1.msra.mxu0 %v1482
    %1520 = vmatprep.subr.mxu0 0.0
    %1521 = vmatpush1.msra.mxu0 %v1483
    %1522 = vmatprep.subr.mxu0 0.0
    %1523 = vmatpush1.msra.mxu0 %v1484
    %1524 = vmatprep.subr.mxu0 0.0
    %1525 = vmatpush1.msra.mxu0 %v1485
    %1526 = vmatprep.subr.mxu0 0.0
    %1527 = vmatpush1.msra.mxu0 %v1486
    %1528 = vmatprep.subr.mxu0 0.0
    %1529 = vmatpush1.msra.mxu0 %v1487
    %1530 = vmatprep.subr.mxu0 0.0
    %1531 = vmatpush1.msra.mxu0 %v1488
    %1532 = vmatprep.subr.mxu0 0.0
    %1533 = vmatpush1.msra.mxu0 %v1489
    %1534 = vmatprep.subr.mxu0 0.0
    %1535 = vmatpush1.msra.mxu0 %v1490
    %1536 = vmatprep.subr.mxu0 0.0
    %1537 = vmatpush1.msra.mxu0 %v1491
    %1538 = vmatprep.subr.mxu0 0.0
    %1539 = vmatpush1.msra.mxu0 %v1492
    %1540 = vmatprep.subr.mxu0 0.0
    %1541 = vmatpush1.msra.mxu0 %v1493
    %1542 = vmatprep.subr.mxu0 0.0
    %1543 = vmatpush1.msra.mxu0 %v1494
    %1544 = vmatprep.subr.mxu0 0.0
    %1545 = vmatpush1.msra.mxu0 %v1495
    %1546 = vmatprep.subr.mxu0 0.0
    %1547 = vmatpush1.msra.mxu0 %v1496
    %1548 = vmatprep.subr.mxu0 0.0
    %1549 = vmatpush1.msra.mxu0 %v1497
    %1550 = vmatprep.subr.mxu0 0.0
    %1551 = vmatpush1.msra.mxu0 %v1498
    %1552 = vmatprep.subr.mxu0 0.0
    %1553 = vmatpush1.msra.mxu0 %v1499
    %1554 = vmatprep.subr.mxu0 0.0
    %1555 = vmatpush1.msra.mxu0 %v1500
    %1556 = vmatprep.subr.mxu0 0.0
    %1557 = vmatpush1.msra.mxu0 %v1501
    %1558 = vmatprep.subr.mxu0 0.0
    %1559 = vmatpush1.msra.mxu0 %v1502
    %1560 = vmatprep.subr.mxu0 0.0
    %1561 = vmatpush1.msra.mxu0 %v1503
    %1562 = vmatprep.subr.mxu0 0.0
    %1563 = vmatpush1.msra.mxu0 %v1504
    %1564 = vmatprep.subr.mxu0 0.0
    %1565 = vmatpush1.msra.mxu0 %v1505
    %1566 = vmatprep.subr.mxu0 0.0
    %1567 = vmatpush1.msra.mxu0 %v1506
    %1568 = vmatprep.subr.mxu0 0.0
    %1569 = vmatpush1.msra.mxu0 %v1507
    %1570 = vmatprep.subr.mxu0 0.0
    %1571 = vmatpush1.msra.mxu0 %v1508
    %1572 = vmatprep.subr.mxu0 0.0
    %1573 = vmatpush1.msra.mxu0 %v1509
    %1574 = vmatprep.subr.mxu0 0.0
    %1575 = vmatpush1.msra.mxu0 %v1510
    %1576 = vmatprep.subr.mxu0 0.0
    %1577 = vmatpush1.msra.mxu0 %v1511
    %1578 = vmatprep.subr.mxu0 0.0
    %1579 = vmatpush1.msra.mxu0 %v1512
    %1580 = vmatprep.subr.mxu0 0.0
    %1581 = vmatpush1.msra.mxu0 %v1513
    %1582 = vmatprep.mubr.f32.mxu0 %v1515
    %1583 = vmatmul.mubr.f32.gmra.mrb[0].mxu0 %v1514
    %v1584 = vpop.f32.mrb[0].mxu0
    %v1585 = vadd.f32 0.0, %v1584
    %v1586 = vpop.f32.mrb[0].mxu0
    %1587 = vdwg.mxu0
    %v1588 = vadd.f32 %v1406, %v1585
    %v1589 = vrot.slane %v209, 7
    %v1590 = vrot.slane %v210, 7
    %1593 = vmatprep.subr.mxu0 0.0
    %1594 = vmatpush1.msra.mxu0 %v1482
    %1595 = vmatprep.subr.mxu0 0.0
    %1596 = vmatpush1.msra.mxu0 %v1483
    %1597 = vmatprep.subr.mxu0 0.0
    %1598 = vmatpush1.msra.mxu0 %v1484
    %1599 = vmatprep.subr.mxu0 0.0
    %1600 = vmatpush1.msra.mxu0 %v1485
    %1601 = vmatprep.subr.mxu0 0.0
    %1602 = vmatpush1.msra.mxu0 %v1486
    %1603 = vmatprep.subr.mxu0 0.0
    %1604 = vmatpush1.msra.mxu0 %v1487
    %1605 = vmatprep.subr.mxu0 0.0
    %1606 = vmatpush1.msra.mxu0 %v1488
    %1607 = vmatprep.subr.mxu0 0.0
    %1608 = vmatpush1.msra.mxu0 %v1489
    %1609 = vmatprep.subr.mxu0 0.0
    %1610 = vmatpush1.msra.mxu0 %v1490
    %1611 = vmatprep.subr.mxu0 0.0
    %1612 = vmatpush1.msra.mxu0 %v1491
    %1613 = vmatprep.subr.mxu0 0.0
    %1614 = vmatpush1.msra.mxu0 %v1492
    %1615 = vmatprep.subr.mxu0 0.0
    %1616 = vmatpush1.msra.mxu0 %v1493
    %1617 = vmatprep.subr.mxu0 0.0
    %1618 = vmatpush1.msra.mxu0 %v1494
    %1619 = vmatprep.subr.mxu0 0.0
    %1620 = vmatpush1.msra.mxu0 %v1495
    %1621 = vmatprep.subr.mxu0 0.0
    %1622 = vmatpush1.msra.mxu0 %v1496
    %1623 = vmatprep.subr.mxu0 0.0
    %1624 = vmatpush1.msra.mxu0 %v1497
    %1625 = vmatprep.subr.mxu0 0.0
    %1626 = vmatpush1.msra.mxu0 %v1498
    %1627 = vmatprep.subr.mxu0 0.0
    %1628 = vmatpush1.msra.mxu0 %v1499
    %1629 = vmatprep.subr.mxu0 0.0
    %1630 = vmatpush1.msra.mxu0 %v1500
    %1631 = vmatprep.subr.mxu0 0.0
    %1632 = vmatpush1.msra.mxu0 %v1501
    %1633 = vmatprep.subr.mxu0 0.0
    %1634 = vmatpush1.msra.mxu0 %v1502
    %1635 = vmatprep.subr.mxu0 0.0
    %1636 = vmatpush1.msra.mxu0 %v1503
    %1637 = vmatprep.subr.mxu0 0.0
    %1638 = vmatpush1.msra.mxu0 %v1504
    %1639 = vmatprep.subr.mxu0 0.0
    %1640 = vmatpush1.msra.mxu0 %v1505
    %1641 = vmatprep.subr.mxu0 0.0
    %1642 = vmatpush1.msra.mxu0 %v1506
    %1643 = vmatprep.subr.mxu0 0.0
    %1644 = vmatpush1.msra.mxu0 %v1507
    %1645 = vmatprep.subr.mxu0 0.0
    %1646 = vmatpush1.msra.mxu0 %v1508
    %1647 = vmatprep.subr.mxu0 0.0
    %1648 = vmatpush1.msra.mxu0 %v1509
    %1649 = vmatprep.subr.mxu0 0.0
    %1650 = vmatpush1.msra.mxu0 %v1510
    %1651 = vmatprep.subr.mxu0 0.0
    %1652 = vmatpush1.msra.mxu0 %v1511
    %1653 = vmatprep.subr.mxu0 0.0
    %1654 = vmatpush1.msra.mxu0 %v1512
    %1655 = vmatprep.subr.mxu0 0.0
    %1656 = vmatpush1.msra.mxu0 %v1513
    %1657 = vmatprep.mubr.f32.mxu0 %v1590
    %1658 = vmatmul.mubr.f32.gmra.mrb[0].mxu0 %v1589
    %v1659 = vpop.f32.mrb[0].mxu0
    %v1660 = vadd.f32 0.0, %v1659
    %v1661 = vpop.f32.mrb[0].mxu0
    %1662 = vdwg.mxu0
    %v1663 = vadd.f32 %v1481, %v1660
    %vm1664 = vcmp.ge.f32.partialorder %v1588, 1.0
    %v1665 = vsel %vm1664, 1, 0
    %v1666 = vcvt.s32.f32 %v1665
    %vm1667 = vcmask 73728
    %1668 = vst.msk [vmem:[#allocation2] sm:$0x1] %vm1667, %v1666
    %vm1669 = vcmp.ge.f32.partialorder %v1663, 1.0
    %v1670 = vsel %vm1669, 1, 0
    %v1671 = vcvt.s32.f32 %v1670
    %1672 = vst.msk [vmem:[#allocation2 + $0x1] sm:$0x1] %vm1667, %v1671
    // Predicated region
    $region22: #{net_forward.1} parent=1 // pred_check
      _
    $region23: #{net_forward.1} parent=1 // pred_check_branch
      %1674 = sbr.rel (0) target = $region25
    $region24: #{net_forward.1} parent=1 // pred_region
      %s1676 = ssub.s32 32, 32
      %1677 = vsyncadd [#allocation3], %s1676
      %s1679 = sshll.u32 [#allocation2], 4
      %s1680 = int_to_ptr.vmem [resolvable:$true] %s1679
      %1682 = dma.vmem_to_hbm [thread:$0]  %s1680, 32, %s5, [#allocation3]
    $region25: #{net_forward.1} parent=1 // pred_fallthru
      _
    // Predicated region
    $region26: #{net_forward.1} parent=1 // pred_check
      _
    $region27: #{net_forward.1} parent=1 // pred_check_branch
      %1684 = sbr.rel (0) target = $region29
    $region28: #{net_forward.1} parent=1 // pred_region
      %1685 = dma.done [#allocation3], 32
    $region29: #{net_forward.1} parent=1 // pred_fallthru
      _
    %1686 = vsyncpa [#allocation3], 1

</llo_original>
